<compile_context>
chip_gen: v7x
topology: tpu7x:2x2x1
jax: 0.10.0
libtpu: 0.0.40
codegen_flags: <defaults>
</compile_context>

<pallas_src>
import functools

import jax
import jax.numpy as jnp
from jax import lax
from jax.experimental import pallas as pl
from jax.experimental.pallas import tpu as pltpu


def _mha_kernel(q_ref, k_ref, v_ref, bias_ref,
                wq_ref, wk_ref, wv_ref, wo_ref, bo_ref,
                o_ref, *, heads, head_dim):
    f32 = jnp.float32
    bf16 = jnp.bfloat16

    # Fused all-head projections: (Tq|Lk, E) @ (E, E), contraction over E.
    # wq_ref already carries the 1/sqrt(embed_size) scale and each W is
    # pre-transposed / block-diagonalized in the wrapper.
    q = jnp.dot(q_ref[...], wq_ref[...], preferred_element_type=f32)   # (Tq, E)
    k = jnp.dot(k_ref[...], wk_ref[...], preferred_element_type=f32)   # (Lk, E)
    v = jnp.dot(v_ref[...], wv_ref[...], preferred_element_type=f32)   # (Lk, E)

    bias = bias_ref[...].astype(f32)                                   # (Tq, Lk) additive mask

    ctx_parts = []
    for h in range(heads):                                             # unrolled, static slices
        sl = slice(h * head_dim, (h + 1) * head_dim)
        qh = q[:, sl].astype(bf16)                                     # (Tq, D)
        kh = k[:, sl].astype(bf16)                                     # (Lk, D)
        vh = v[:, sl].astype(bf16)                                     # (Lk, D)

        # scores: contract over D without any in-kernel transpose.
        e = lax.dot_general(qh, kh, (((1,), (1,)), ((), ())),
                            preferred_element_type=f32)                # (Tq, Lk)
        e = e + bias

        m = jnp.max(e, axis=-1, keepdims=True)
        p = jnp.exp(e - m)
        s = jnp.sum(p, axis=-1, keepdims=True)
        att = p * pl.reciprocal(s, approx=True)                        # softmax over keys

        ctx_parts.append(jnp.dot(att.astype(bf16), vh,
                                 preferred_element_type=f32))          # (Tq, D)

    ctx = jnp.concatenate(ctx_parts, axis=-1).astype(bf16)             # (Tq, E)

    # fc_out: one (Tq, E) @ (E, E) matmul + bias, single lane-dense store.
    out = jnp.dot(ctx, wo_ref[...], preferred_element_type=f32) + bo_ref[...]
    o_ref[...] = out


def self_attention(values, keys, query, mask, params, *, embed_size, heads,
                   q_tile=None):
    """values/keys/query: (N, L, E) float32; mask: (N, Q, K) (0 = masked out)."""
    N, Lq, E = query.shape
    Lk = keys.shape[1]
    Lv = values.shape[1]
    assert Lv == Lk, "attention requires key_len == value_len"
    D = E // heads
    assert D * heads == E

    wv, wk, wq, wo, bo = params
    eye = jnp.eye(heads, dtype=jnp.float32)
    scale = jnp.float32(1.0 / (embed_size ** 0.5))
    # Block-diagonal fused projection weights (already transposed for x @ W).
    wq_big = (jnp.kron(eye, wq.T) * scale).astype(jnp.bfloat16)        # (E, E), scale folded in
    wk_big = jnp.kron(eye, wk.T).astype(jnp.bfloat16)                  # (E, E)
    wv_big = jnp.kron(eye, wv.T).astype(jnp.bfloat16)                  # (E, E)
    wo_t = wo.T.astype(jnp.bfloat16)                                   # (E, E)
    bo2 = bo.reshape(1, E).astype(jnp.float32)

    # Additive mask bias: 0 where attended, -1e20 where masked (bf16 halves DMA).
    mask_bias = ((mask.astype(jnp.float32) - 1.0) * jnp.float32(1e20)).astype(jnp.bfloat16)

    qb = query.astype(jnp.bfloat16)
    kb = keys.astype(jnp.bfloat16)
    vb = values.astype(jnp.bfloat16)

    if q_tile is None:
        q_tile = Lq if Lq <= 512 else 512
    if Lq % q_tile != 0:
        q_tile = Lq
    n_q = Lq // q_tile

    kernel = functools.partial(_mha_kernel, heads=heads, head_dim=D)

    out = pl.pallas_call(
        kernel,
        out_shape=jax.ShapeDtypeStruct((N, Lq, E), jnp.float32),
        grid=(N, n_q),
        in_specs=[
            pl.BlockSpec((None, q_tile, E), lambda n, qi: (n, qi, 0)),   # queries
            pl.BlockSpec((None, Lk, E), lambda n, qi: (n, 0, 0)),        # keys
            pl.BlockSpec((None, Lv, E), lambda n, qi: (n, 0, 0)),        # values
            pl.BlockSpec((None, q_tile, Lk), lambda n, qi: (n, qi, 0)),  # additive mask bias
            pl.BlockSpec((E, E), lambda n, qi: (0, 0)),                  # Wq (scaled, block-diag)
            pl.BlockSpec((E, E), lambda n, qi: (0, 0)),                  # Wk (block-diag)
            pl.BlockSpec((E, E), lambda n, qi: (0, 0)),                  # Wv (block-diag)
            pl.BlockSpec((E, E), lambda n, qi: (0, 0)),                  # Wo^T
            pl.BlockSpec((1, E), lambda n, qi: (0, 0)),                  # b_out
        ],
        out_specs=pl.BlockSpec((None, q_tile, E), lambda n, qi: (n, qi, 0)),
        compiler_params=pltpu.CompilerParams(
            dimension_semantics=("parallel", "parallel"),
            vmem_limit_bytes=32 * 1024 * 1024),
    )(qb, kb, vb, mask_bias, wq_big, wk_big, wv_big, wo_t, bo2)
    return out


def _reference(values, keys, query, mask, params, *, embed_size, heads):
    """Pure-JAX transcription of the PyTorch forward (for validation)."""
    N, Lq, E = query.shape
    D = E // heads
    wv, wk, wq, wo, bo = params
    v = values.reshape(N, -1, heads, D) @ wv.T
    k = keys.reshape(N, -1, heads, D) @ wk.T
    q = query.reshape(N, -1, heads, D) @ wq.T
    energy = jnp.einsum('nqhd,nkhd->nhqk', q, k)
    energy = jnp.where(mask[:, None, :, :] == 0, -1e20, energy)
    att = jax.nn.softmax(energy / (embed_size ** 0.5), axis=3)
    out = jnp.einsum('nhql,nlhd->nqhd', att, v).reshape(N, Lq, heads * D)
    return out @ wo.T + bo


def _init_params(key, embed_size, heads):
    """Deterministic nn.Linear-style init (uniform +/- 1/sqrt(fan_in))."""
    D = embed_size // heads
    ks = jax.random.split(key, 5)
    lim_d = 1.0 / (D ** 0.5)
    lim_e = 1.0 / (embed_size ** 0.5)
    wv = jax.random.uniform(ks[0], (D, D), jnp.float32, -lim_d, lim_d)
    wk = jax.random.uniform(ks[1], (D, D), jnp.float32, -lim_d, lim_d)
    wq = jax.random.uniform(ks[2], (D, D), jnp.float32, -lim_d, lim_d)
    wo = jax.random.uniform(ks[3], (embed_size, embed_size), jnp.float32, -lim_e, lim_e)
    bo = jax.random.uniform(ks[4], (embed_size,), jnp.float32, -lim_e, lim_e)
    return (wv, wk, wq, wo, bo)


if __name__ == "__main__":
    EMBED, HEADS = 32, 4
    N, SEQ = 2, 8

    root = jax.random.PRNGKey(0)
    k_v, k_k, k_q, k_p = jax.random.split(root, 4)

    values = jax.random.normal(k_v, (N, SEQ, EMBED), jnp.float32)
    keys = jax.random.normal(k_k, (N, SEQ, EMBED), jnp.float32)
    query = jax.random.normal(k_q, (N, SEQ, EMBED), jnp.float32)

    # padding-style mask: batch 1 cannot attend to its last 2 key positions
    mask = jnp.ones((N, SEQ, SEQ), jnp.float32)
    mask = mask.at[1, :, SEQ - 2:].set(0.0)

    params = _init_params(k_p, EMBED, HEADS)

    out = self_attention(values, keys, query, mask, params,
                         embed_size=EMBED, heads=HEADS)
    out = jax.block_until_ready(out)

    ref = _reference(values, keys, query, mask, params,
                     embed_size=EMBED, heads=HEADS)
    assert out.shape == (N, SEQ, EMBED)
    # bf16 MXU operands + approx reciprocal -> loosened (but still tight) tolerance.
    assert jnp.allclose(out, ref, atol=5e-2, rtol=5e-2), "mismatch vs reference"

    print("KERNEL_OK")
</pallas_src>

<mosaic_0001>
module attributes {stable_mosaic.version = 11 : i64} {
  func.func @_mha_kernel(%arg0: i32, %arg1: i32, %arg2: memref<1x8x32xbf16, #tpu.memory_space<vmem>>, %arg3: memref<1x8x32xbf16, #tpu.memory_space<vmem>>, %arg4: memref<1x8x32xbf16, #tpu.memory_space<vmem>>, %arg5: memref<1x8x8xbf16, #tpu.memory_space<vmem>>, %arg6: memref<32x32xbf16, #tpu.memory_space<vmem>>, %arg7: memref<32x32xbf16, #tpu.memory_space<vmem>>, %arg8: memref<32x32xbf16, #tpu.memory_space<vmem>>, %arg9: memref<32x32xbf16, #tpu.memory_space<vmem>>, %arg10: memref<1x32xf32, #tpu.memory_space<vmem>>, %arg11: memref<1x8x32xf32, #tpu.memory_space<vmem>>) attributes {dimension_semantics = [#tpu.dimension_semantics<parallel>, #tpu.dimension_semantics<parallel>], iteration_bounds = array<i64: 2, 1>, scalar_prefetch = 0 : i64, scratch_operands = 0 : i64, tpu.core_type = #tpu.core_type<tc>, window_params = [{transform_indices = @transform_0, window_bounds = array<i64: 1, 8, 32>}, {transform_indices = @transform_1, window_bounds = array<i64: 1, 8, 32>}, {transform_indices = @transform_2, window_bounds = array<i64: 1, 8, 32>}, {transform_indices = @transform_3, window_bounds = array<i64: 1, 8, 8>}, {pipeline_mode = #tpu.pipeline_mode<synchronous>, transform_indices = @transform_4, window_bounds = array<i64: 32, 32>}, {pipeline_mode = #tpu.pipeline_mode<synchronous>, transform_indices = @transform_5, window_bounds = array<i64: 32, 32>}, {pipeline_mode = #tpu.pipeline_mode<synchronous>, transform_indices = @transform_6, window_bounds = array<i64: 32, 32>}, {pipeline_mode = #tpu.pipeline_mode<synchronous>, transform_indices = @transform_7, window_bounds = array<i64: 32, 32>}, {pipeline_mode = #tpu.pipeline_mode<synchronous>, transform_indices = @transform_8, window_bounds = array<i64: 1, 32>}, {transform_indices = @transform_9, window_bounds = array<i64: 1, 8, 32>}]} {
    %c0 = arith.constant 0 : index
    %c0_0 = arith.constant 0 : index
    %c0_1 = arith.constant 0 : index
    %0 = vector.load %arg2[%c0, %c0_0, %c0_1] : memref<1x8x32xbf16, #tpu.memory_space<vmem>>, vector<1x8x32xbf16>
    %1 = vector.shape_cast %0 : vector<1x8x32xbf16> to vector<8x32xbf16>
    %c0_2 = arith.constant 0 : index
    %c0_3 = arith.constant 0 : index
    %2 = vector.load %arg6[%c0_2, %c0_3] : memref<32x32xbf16, #tpu.memory_space<vmem>>, vector<32x32xbf16>
    %cst = arith.constant dense<0.000000e+00> : vector<8x32xf32>
    %3 = tpu.matmul %1, %2, %cst {dimension_numbers = #tpu.dot_dimension_numbers<[1], [0], [0], [1], [0, 0, 1, 1], [], []>} : vector<8x32xbf16>, vector<32x32xbf16>, vector<8x32xf32> -> vector<8x32xf32>
    %c0_4 = arith.constant 0 : index
    %c0_5 = arith.constant 0 : index
    %c0_6 = arith.constant 0 : index
    %4 = vector.load %arg3[%c0_4, %c0_5, %c0_6] : memref<1x8x32xbf16, #tpu.memory_space<vmem>>, vector<1x8x32xbf16>
    %5 = vector.shape_cast %4 : vector<1x8x32xbf16> to vector<8x32xbf16>
    %c0_7 = arith.constant 0 : index
    %c0_8 = arith.constant 0 : index
    %6 = vector.load %arg7[%c0_7, %c0_8] : memref<32x32xbf16, #tpu.memory_space<vmem>>, vector<32x32xbf16>
    %cst_9 = arith.constant dense<0.000000e+00> : vector<8x32xf32>
    %7 = tpu.matmul %5, %6, %cst_9 {dimension_numbers = #tpu.dot_dimension_numbers<[1], [0], [0], [1], [0, 0, 1, 1], [], []>} : vector<8x32xbf16>, vector<32x32xbf16>, vector<8x32xf32> -> vector<8x32xf32>
    %c0_10 = arith.constant 0 : index
    %c0_11 = arith.constant 0 : index
    %c0_12 = arith.constant 0 : index
    %8 = vector.load %arg4[%c0_10, %c0_11, %c0_12] : memref<1x8x32xbf16, #tpu.memory_space<vmem>>, vector<1x8x32xbf16>
    %9 = vector.shape_cast %8 : vector<1x8x32xbf16> to vector<8x32xbf16>
    %c0_13 = arith.constant 0 : index
    %c0_14 = arith.constant 0 : index
    %10 = vector.load %arg8[%c0_13, %c0_14] : memref<32x32xbf16, #tpu.memory_space<vmem>>, vector<32x32xbf16>
    %cst_15 = arith.constant dense<0.000000e+00> : vector<8x32xf32>
    %11 = tpu.matmul %9, %10, %cst_15 {dimension_numbers = #tpu.dot_dimension_numbers<[1], [0], [0], [1], [0, 0, 1, 1], [], []>} : vector<8x32xbf16>, vector<32x32xbf16>, vector<8x32xf32> -> vector<8x32xf32>
    %c0_16 = arith.constant 0 : index
    %c0_17 = arith.constant 0 : index
    %c0_18 = arith.constant 0 : index
    %12 = vector.load %arg5[%c0_16, %c0_17, %c0_18] : memref<1x8x8xbf16, #tpu.memory_space<vmem>>, vector<1x8x8xbf16>
    %13 = vector.shape_cast %12 : vector<1x8x8xbf16> to vector<8x8xbf16>
    %14 = arith.extf %13 : vector<8x8xbf16> to vector<8x8xf32>
    %15 = vector.extract_strided_slice %3 {offsets = [0, 0], sizes = [8, 8], strides = [1, 1]} : vector<8x32xf32> to vector<8x8xf32>
    %16 = arith.truncf %15 : vector<8x8xf32> to vector<8x8xbf16>
    %17 = vector.extract_strided_slice %7 {offsets = [0, 0], sizes = [8, 8], strides = [1, 1]} : vector<8x32xf32> to vector<8x8xf32>
    %18 = arith.truncf %17 : vector<8x8xf32> to vector<8x8xbf16>
    %19 = vector.extract_strided_slice %11 {offsets = [0, 0], sizes = [8, 8], strides = [1, 1]} : vector<8x32xf32> to vector<8x8xf32>
    %20 = arith.truncf %19 : vector<8x8xf32> to vector<8x8xbf16>
    %cst_19 = arith.constant dense<0.000000e+00> : vector<8x8xf32>
    %21 = tpu.matmul %16, %18, %cst_19 {dimension_numbers = #tpu.dot_dimension_numbers<[1], [1], [0], [0], [0, 0, 1, 0], [], []>} : vector<8x8xbf16>, vector<8x8xbf16>, vector<8x8xf32> -> vector<8x8xf32>
    %22 = arith.addf %21, %14 : vector<8x8xf32>
    %cst_20 = arith.constant dense<0xFF800000> : vector<8xf32>
    %23 = vector.multi_reduction <maximumf>, %22, %cst_20 [1] : vector<8x8xf32> to vector<8xf32>
    %24 = vector.shape_cast %23 : vector<8xf32> to vector<8x1xf32>
    %25 = vector.broadcast %24 : vector<8x1xf32> to vector<8x8xf32>
    %26 = arith.subf %22, %25 : vector<8x8xf32>
    %27 = math.exp %26 : vector<8x8xf32>
    %cst_21 = arith.constant dense<0.000000e+00> : vector<8xf32>
    %28 = vector.multi_reduction <add>, %27, %cst_21 [1] : vector<8x8xf32> to vector<8xf32>
    %29 = vector.shape_cast %28 : vector<8xf32> to vector<8x1xf32>
    %30 = tpu.reciprocal %29 {approx = true} : vector<8x1xf32> -> vector<8x1xf32>
    %31 = vector.broadcast %30 : vector<8x1xf32> to vector<8x8xf32>
    %32 = arith.mulf %27, %31 : vector<8x8xf32>
    %33 = arith.truncf %32 : vector<8x8xf32> to vector<8x8xbf16>
    %cst_22 = arith.constant dense<0.000000e+00> : vector<8x8xf32>
    %34 = tpu.matmul %33, %20, %cst_22 {dimension_numbers = #tpu.dot_dimension_numbers<[1], [0], [0], [1], [0, 0, 1, 1], [], []>} : vector<8x8xbf16>, vector<8x8xbf16>, vector<8x8xf32> -> vector<8x8xf32>
    %35 = vector.extract_strided_slice %3 {offsets = [0, 8], sizes = [8, 8], strides = [1, 1]} : vector<8x32xf32> to vector<8x8xf32>
    %36 = arith.truncf %35 : vector<8x8xf32> to vector<8x8xbf16>
    %37 = vector.extract_strided_slice %7 {offsets = [0, 8], sizes = [8, 8], strides = [1, 1]} : vector<8x32xf32> to vector<8x8xf32>
    %38 = arith.truncf %37 : vector<8x8xf32> to vector<8x8xbf16>
    %39 = vector.extract_strided_slice %11 {offsets = [0, 8], sizes = [8, 8], strides = [1, 1]} : vector<8x32xf32> to vector<8x8xf32>
    %40 = arith.truncf %39 : vector<8x8xf32> to vector<8x8xbf16>
    %cst_23 = arith.constant dense<0.000000e+00> : vector<8x8xf32>
    %41 = tpu.matmul %36, %38, %cst_23 {dimension_numbers = #tpu.dot_dimension_numbers<[1], [1], [0], [0], [0, 0, 1, 0], [], []>} : vector<8x8xbf16>, vector<8x8xbf16>, vector<8x8xf32> -> vector<8x8xf32>
    %42 = arith.addf %41, %14 : vector<8x8xf32>
    %cst_24 = arith.constant dense<0xFF800000> : vector<8xf32>
    %43 = vector.multi_reduction <maximumf>, %42, %cst_24 [1] : vector<8x8xf32> to vector<8xf32>
    %44 = vector.shape_cast %43 : vector<8xf32> to vector<8x1xf32>
    %45 = vector.broadcast %44 : vector<8x1xf32> to vector<8x8xf32>
    %46 = arith.subf %42, %45 : vector<8x8xf32>
    %47 = math.exp %46 : vector<8x8xf32>
    %cst_25 = arith.constant dense<0.000000e+00> : vector<8xf32>
    %48 = vector.multi_reduction <add>, %47, %cst_25 [1] : vector<8x8xf32> to vector<8xf32>
    %49 = vector.shape_cast %48 : vector<8xf32> to vector<8x1xf32>
    %50 = tpu.reciprocal %49 {approx = true} : vector<8x1xf32> -> vector<8x1xf32>
    %51 = vector.broadcast %50 : vector<8x1xf32> to vector<8x8xf32>
    %52 = arith.mulf %47, %51 : vector<8x8xf32>
    %53 = arith.truncf %52 : vector<8x8xf32> to vector<8x8xbf16>
    %cst_26 = arith.constant dense<0.000000e+00> : vector<8x8xf32>
    %54 = tpu.matmul %53, %40, %cst_26 {dimension_numbers = #tpu.dot_dimension_numbers<[1], [0], [0], [1], [0, 0, 1, 1], [], []>} : vector<8x8xbf16>, vector<8x8xbf16>, vector<8x8xf32> -> vector<8x8xf32>
    %55 = vector.extract_strided_slice %3 {offsets = [0, 16], sizes = [8, 8], strides = [1, 1]} : vector<8x32xf32> to vector<8x8xf32>
    %56 = arith.truncf %55 : vector<8x8xf32> to vector<8x8xbf16>
    %57 = vector.extract_strided_slice %7 {offsets = [0, 16], sizes = [8, 8], strides = [1, 1]} : vector<8x32xf32> to vector<8x8xf32>
    %58 = arith.truncf %57 : vector<8x8xf32> to vector<8x8xbf16>
    %59 = vector.extract_strided_slice %11 {offsets = [0, 16], sizes = [8, 8], strides = [1, 1]} : vector<8x32xf32> to vector<8x8xf32>
    %60 = arith.truncf %59 : vector<8x8xf32> to vector<8x8xbf16>
    %cst_27 = arith.constant dense<0.000000e+00> : vector<8x8xf32>
    %61 = tpu.matmul %56, %58, %cst_27 {dimension_numbers = #tpu.dot_dimension_numbers<[1], [1], [0], [0], [0, 0, 1, 0], [], []>} : vector<8x8xbf16>, vector<8x8xbf16>, vector<8x8xf32> -> vector<8x8xf32>
    %62 = arith.addf %61, %14 : vector<8x8xf32>
    %cst_28 = arith.constant dense<0xFF800000> : vector<8xf32>
    %63 = vector.multi_reduction <maximumf>, %62, %cst_28 [1] : vector<8x8xf32> to vector<8xf32>
    %64 = vector.shape_cast %63 : vector<8xf32> to vector<8x1xf32>
    %65 = vector.broadcast %64 : vector<8x1xf32> to vector<8x8xf32>
    %66 = arith.subf %62, %65 : vector<8x8xf32>
    %67 = math.exp %66 : vector<8x8xf32>
    %cst_29 = arith.constant dense<0.000000e+00> : vector<8xf32>
    %68 = vector.multi_reduction <add>, %67, %cst_29 [1] : vector<8x8xf32> to vector<8xf32>
    %69 = vector.shape_cast %68 : vector<8xf32> to vector<8x1xf32>
    %70 = tpu.reciprocal %69 {approx = true} : vector<8x1xf32> -> vector<8x1xf32>
    %71 = vector.broadcast %70 : vector<8x1xf32> to vector<8x8xf32>
    %72 = arith.mulf %67, %71 : vector<8x8xf32>
    %73 = arith.truncf %72 : vector<8x8xf32> to vector<8x8xbf16>
    %cst_30 = arith.constant dense<0.000000e+00> : vector<8x8xf32>
    %74 = tpu.matmul %73, %60, %cst_30 {dimension_numbers = #tpu.dot_dimension_numbers<[1], [0], [0], [1], [0, 0, 1, 1], [], []>} : vector<8x8xbf16>, vector<8x8xbf16>, vector<8x8xf32> -> vector<8x8xf32>
    %75 = vector.extract_strided_slice %3 {offsets = [0, 24], sizes = [8, 8], strides = [1, 1]} : vector<8x32xf32> to vector<8x8xf32>
    %76 = arith.truncf %75 : vector<8x8xf32> to vector<8x8xbf16>
    %77 = vector.extract_strided_slice %7 {offsets = [0, 24], sizes = [8, 8], strides = [1, 1]} : vector<8x32xf32> to vector<8x8xf32>
    %78 = arith.truncf %77 : vector<8x8xf32> to vector<8x8xbf16>
    %79 = vector.extract_strided_slice %11 {offsets = [0, 24], sizes = [8, 8], strides = [1, 1]} : vector<8x32xf32> to vector<8x8xf32>
    %80 = arith.truncf %79 : vector<8x8xf32> to vector<8x8xbf16>
    %cst_31 = arith.constant dense<0.000000e+00> : vector<8x8xf32>
    %81 = tpu.matmul %76, %78, %cst_31 {dimension_numbers = #tpu.dot_dimension_numbers<[1], [1], [0], [0], [0, 0, 1, 0], [], []>} : vector<8x8xbf16>, vector<8x8xbf16>, vector<8x8xf32> -> vector<8x8xf32>
    %82 = arith.addf %81, %14 : vector<8x8xf32>
    %cst_32 = arith.constant dense<0xFF800000> : vector<8xf32>
    %83 = vector.multi_reduction <maximumf>, %82, %cst_32 [1] : vector<8x8xf32> to vector<8xf32>
    %84 = vector.shape_cast %83 : vector<8xf32> to vector<8x1xf32>
    %85 = vector.broadcast %84 : vector<8x1xf32> to vector<8x8xf32>
    %86 = arith.subf %82, %85 : vector<8x8xf32>
    %87 = math.exp %86 : vector<8x8xf32>
    %cst_33 = arith.constant dense<0.000000e+00> : vector<8xf32>
    %88 = vector.multi_reduction <add>, %87, %cst_33 [1] : vector<8x8xf32> to vector<8xf32>
    %89 = vector.shape_cast %88 : vector<8xf32> to vector<8x1xf32>
    %90 = tpu.reciprocal %89 {approx = true} : vector<8x1xf32> -> vector<8x1xf32>
    %91 = vector.broadcast %90 : vector<8x1xf32> to vector<8x8xf32>
    %92 = arith.mulf %87, %91 : vector<8x8xf32>
    %93 = arith.truncf %92 : vector<8x8xf32> to vector<8x8xbf16>
    %cst_34 = arith.constant dense<0.000000e+00> : vector<8x8xf32>
    %94 = tpu.matmul %93, %80, %cst_34 {dimension_numbers = #tpu.dot_dimension_numbers<[1], [0], [0], [1], [0, 0, 1, 1], [], []>} : vector<8x8xbf16>, vector<8x8xbf16>, vector<8x8xf32> -> vector<8x8xf32>
    %95 = tpu.concatenate %34, %54, %74, %94 in 1 : vector<8x8xf32>, vector<8x8xf32>, vector<8x8xf32>, vector<8x8xf32> -> vector<8x32xf32>
    %96 = arith.truncf %95 : vector<8x32xf32> to vector<8x32xbf16>
    %c0_35 = arith.constant 0 : index
    %c0_36 = arith.constant 0 : index
    %97 = vector.load %arg9[%c0_35, %c0_36] : memref<32x32xbf16, #tpu.memory_space<vmem>>, vector<32x32xbf16>
    %cst_37 = arith.constant dense<0.000000e+00> : vector<8x32xf32>
    %98 = tpu.matmul %96, %97, %cst_37 {dimension_numbers = #tpu.dot_dimension_numbers<[1], [0], [0], [1], [0, 0, 1, 1], [], []>} : vector<8x32xbf16>, vector<32x32xbf16>, vector<8x32xf32> -> vector<8x32xf32>
    %c0_38 = arith.constant 0 : index
    %c0_39 = arith.constant 0 : index
    %99 = vector.load %arg10[%c0_38, %c0_39] : memref<1x32xf32, #tpu.memory_space<vmem>>, vector<1x32xf32>
    %100 = vector.broadcast %99 : vector<1x32xf32> to vector<8x32xf32>
    %101 = arith.addf %98, %100 : vector<8x32xf32>
    %c0_40 = arith.constant 0 : index
    %c0_41 = arith.constant 0 : index
    %c0_42 = arith.constant 0 : index
    %102 = vector.load %arg11[%c0_40, %c0_41, %c0_42] : memref<1x8x32xf32, #tpu.memory_space<vmem>>, vector<1x8x32xf32>
    %103 = vector.shape_cast %102 : vector<1x8x32xf32> to vector<8x32xf32>
    %104 = vector.shape_cast %101 : vector<8x32xf32> to vector<1x8x32xf32>
    tpu.vector_store %arg11[%c0_40, %c0_41, %c0_42], %104 {strides = array<i32>} : memref<1x8x32xf32, #tpu.memory_space<vmem>>, vector<1x8x32xf32>,
    return
  }
  func.func @transform_0(%arg0: i32, %arg1: i32) -> (i32, i32, i32) {
    %c0_i32 = arith.constant 0 : i32
    %c0_i32_0 = arith.constant 0 : i32
    return %arg0, %arg1, %c0_i32 : i32, i32, i32
  }
  func.func @transform_1(%arg0: i32, %arg1: i32) -> (i32, i32, i32) {
    %c0_i32 = arith.constant 0 : i32
    %c0_i32_0 = arith.constant 0 : i32
    %c0_i32_1 = arith.constant 0 : i32
    return %arg0, %c0_i32, %c0_i32_0 : i32, i32, i32
  }
  func.func @transform_2(%arg0: i32, %arg1: i32) -> (i32, i32, i32) {
    %c0_i32 = arith.constant 0 : i32
    %c0_i32_0 = arith.constant 0 : i32
    %c0_i32_1 = arith.constant 0 : i32
    return %arg0, %c0_i32, %c0_i32_0 : i32, i32, i32
  }
  func.func @transform_3(%arg0: i32, %arg1: i32) -> (i32, i32, i32) {
    %c0_i32 = arith.constant 0 : i32
    %c0_i32_0 = arith.constant 0 : i32
    return %arg0, %arg1, %c0_i32 : i32, i32, i32
  }
  func.func @transform_4(%arg0: i32, %arg1: i32) -> (i32, i32) {
    %c0_i32 = arith.constant 0 : i32
    %c0_i32_0 = arith.constant 0 : i32
    %c0_i32_1 = arith.constant 0 : i32
    return %c0_i32, %c0_i32_0 : i32, i32
  }
  func.func @transform_5(%arg0: i32, %arg1: i32) -> (i32, i32) {
    %c0_i32 = arith.constant 0 : i32
    %c0_i32_0 = arith.constant 0 : i32
    %c0_i32_1 = arith.constant 0 : i32
    return %c0_i32, %c0_i32_0 : i32, i32
  }
  func.func @transform_6(%arg0: i32, %arg1: i32) -> (i32, i32) {
    %c0_i32 = arith.constant 0 : i32
    %c0_i32_0 = arith.constant 0 : i32
    %c0_i32_1 = arith.constant 0 : i32
    return %c0_i32, %c0_i32_0 : i32, i32
  }
  func.func @transform_7(%arg0: i32, %arg1: i32) -> (i32, i32) {
    %c0_i32 = arith.constant 0 : i32
    %c0_i32_0 = arith.constant 0 : i32
    %c0_i32_1 = arith.constant 0 : i32
    return %c0_i32, %c0_i32_0 : i32, i32
  }
  func.func @transform_8(%arg0: i32, %arg1: i32) -> (i32, i32) {
    %c0_i32 = arith.constant 0 : i32
    %c0_i32_0 = arith.constant 0 : i32
    %c0_i32_1 = arith.constant 0 : i32
    return %c0_i32, %c0_i32_0 : i32, i32
  }
  func.func @transform_9(%arg0: i32, %arg1: i32) -> (i32, i32, i32) {
    %c0_i32 = arith.constant 0 : i32
    %c0_i32_0 = arith.constant 0 : i32
    return %arg0, %arg1, %c0_i32 : i32, i32, i32
  }
}

</mosaic_0001>

<llo_original>
// kernel: tpu_custom_call.1
$region0: #{tpu_custom_call.1}
  #allocation0 [shape = 'u32[]', space=smem, size = 0x4, offset = 0x4, fixed_abs, tag = 'smem constant byte address 0x4 - core index']
  #allocation1 [shape = 'u32[144,128]{1,0:T(1,128)}', space=vmem, size = 0x12000, scoped, tag = 'internal scratch']
  %s0 = inlined_call_operand.hbm [shape: bf16[2,8,32], index: 0, kind: input, shape index: {}]
  %s1 = inlined_call_operand.hbm [shape: bf16[2,8,32], index: 1, kind: input, shape index: {}]
  %s2 = inlined_call_operand.hbm [shape: bf16[2,8,32], index: 2, kind: input, shape index: {}]
  %s3 = inlined_call_operand.hbm [shape: bf16[2,8,8], index: 3, kind: input, shape index: {}]
  %s4 = inlined_call_operand.hbm [shape: bf16[32,32], index: 4, kind: input, shape index: {}]
  %s5 = inlined_call_operand.vmem [shape: bf16[32,32], index: 5, kind: input, shape index: {}]
  %s6 = inlined_call_operand.hbm [shape: bf16[32,32], index: 6, kind: input, shape index: {}]
  %s7 = inlined_call_operand.hbm [shape: bf16[32,32], index: 7, kind: input, shape index: {}]
  %s8 = inlined_call_operand.vmem [shape: f32[1,32], index: 8, kind: input, shape index: {}]
  %s9 = inlined_call_operand.hbm [shape: f32[2,8,32], index: 9, kind: output, shape index: {}]
  %s10 = sld [smem:[#allocation0]]
  $region97: #{tpu_custom_call.1} parent=0
    _
  %s12 = ssub.s32 1, %s10
  %s13 = scalar_select 0, %s12, %s10
  $region1: #{tpu_custom_call.1} parent=0
    #allocation2 [shape = 'u8[4096]{0}', space=vmem, size = 0x1000, scoped, tag = 'input window, operand 0']
    #allocation3 [shape = 's32[2]{0}', space=sflag, size = 0x8, scoped, tag = 'scoped memory for tpu_custom_call.1']
    #allocation4 [shape = 's32[2]{0}', space=sflag, size = 0x8, scoped, tag = 'scoped memory for tpu_custom_call.1']
    #allocation5 [shape = 'u8[4096]{0}', space=vmem, size = 0x1000, scoped, tag = 'input window, operand 1']
    #allocation6 [shape = 's32[2]{0}', space=sflag, size = 0x8, scoped, tag = 'scoped memory for tpu_custom_call.1']
    #allocation7 [shape = 'u8[4096]{0}', space=vmem, size = 0x1000, scoped, tag = 'input window, operand 2']
    #allocation8 [shape = 'u8[4096]{0}', space=vmem, size = 0x1000, scoped, tag = 'input window, operand 3']
    #allocation9 [shape = 's32[2]{0}', space=sflag, size = 0x8, scoped, tag = 'scoped memory for tpu_custom_call.1']
    #allocation10 [shape = 'u8[8192]{0}', space=vmem, size = 0x2000, scoped, tag = 'input window, operand 4, single buffered']
    #allocation11 [shape = 'u8[8192]{0}', space=vmem, size = 0x2000, scoped, tag = 'input window, operand 6, single buffered']
    #allocation12 [shape = 's32[1]{0}', space=sflag, size = 0x4, scoped, tag = 'scoped memory for tpu_custom_call.1']
    #allocation13 [shape = 'u8[8192]{0}', space=vmem, size = 0x2000, scoped, tag = 'input window, operand 7, single buffered']
    #allocation14 [shape = 'u8[8192]{0}', space=vmem, size = 0x2000, scoped, tag = 'output window, operand 0']
    %14 = vsyncpa [#allocation3], 0
    %s15 = scalar_lea.sflag [#allocation3], 1
    %16 = vsyncpa %s15, 0
    %17 = vsyncpa [#allocation6], 0
    %s18 = scalar_lea.sflag [#allocation6], 1
    %19 = vsyncpa %s18, 0
    %20 = vsyncpa [#allocation9], 0
    %s21 = scalar_lea.sflag [#allocation9], 1
    %22 = vsyncpa %s21, 0
    %23 = vsyncpa [#allocation12], 0
    %24 = vsyncpa [#allocation4], 0
    %s25 = scalar_lea.sflag [#allocation4], 1
    %26 = vsyncpa %s25, 0
    loop: start=0, step=1, limit=4
    $region2: #{tpu_custom_call.1} parent=1 // loop_pre_header
      _
    $region3: #{tpu_custom_call.1} parent=1 // loop_header
      %s28 = sphi 0, %s32
      %p29 = scmp.ge.s32.totalorder %s28, 4
      %s35 = sphi 0, %s47
      %s36 = sphi 0, %s43
      %s37 = sphi 0, %s35
      %s38 = sphi 0, %s36
      %s39 = sphi 0, %s37
      %s40 = sphi 0, %s38
      %s52 = sphi 0, %s54
      %s55 = sphi 0, %s52
      %s56 = sphi 0, %s55
      %s72 = sphi 0, %s56
      %s78 = sphi 0, %s80
      %s81 = sphi 0, %s78
      %s82 = sphi 0, %s81
      %s98 = sphi 0, %s82
      %s104 = sphi 0, %s106
      %s107 = sphi 0, %s104
      %s108 = sphi 0, %s107
      %s124 = sphi 0, %s108
      %s132 = sphi 0, %s134
      %s135 = sphi 0, %s132
      %s136 = sphi 0, %s135
      %s152 = sphi 0, %s136
      %s156 = sphi 0, %s156
      %s158 = sphi 0, %s156
      %s159 = sphi 0, %s158
      %s173 = sphi 0, %s159
      %s177 = sphi 0, %s177
      %s179 = sphi 0, %s177
      %s180 = sphi 0, %s179
      %s194 = sphi 0, %s180
      %s198 = sphi 0, %s198
      %s200 = sphi 0, %s198
      %s201 = sphi 0, %s200
      %s215 = sphi 0, %s201
      %s219 = sphi 0, %s219
      %s221 = sphi 0, %s219
      %s222 = sphi 0, %s221
      %s236 = sphi 0, %s222
      %s240 = sphi 0, %s240
      %s242 = sphi 0, %s240
      %s243 = sphi 0, %s242
      %s257 = sphi 0, %s243
      %s265 = sphi 0, %s267
      %s268 = sphi 0, %s265
      %s269 = sphi 0, %s268
      %s285 = sphi 0, %s269
    $region4: #{tpu_custom_call.1} parent=1 // loop_header_branch
      %31 = sbr.rel (%p29) target = $region8
    $region5: #{tpu_custom_call.1} parent=1 // loop_body
      %s33 = ssub.s32 %s28, 1
      %s34 = ssub.s32 %s28, 2
      %s41 = sadd.s32 1, %s36
      %p42 = scmp.ge.s32.totalorder %s41, 1
      %s43 = scalar_select %p42, 0, %s41
      %s44 = sadd.s32 1, %s35
      %s45 = scalar_select %p42, %s44, %s35
      %p46 = scmp.ge.s32.totalorder %s45, 2
      %s47 = scalar_select %p46, 0, %s45
      %s48 = ssub.s32 %s35, %s47
      %s49 = ssub.s32 %s36, %s43
      %s50 = sor.u32 %s48, %s49
      %p51 = scmp.eq.s32.totalorder %s50, 0
      %s53 = sadd.s32 %s52, 1
      %s54 = scalar_select %p51, %s52, %s53
      %p57 = pneg %p51
      %p58 = scmp.eq.s32.totalorder %s28, 1
      %p59 = por %p57, %p58
      %p60 = scmp.ne.s32.totalorder %s52, %s55
      %p61 = scmp.eq.s32.totalorder %s28, 0
      %p62 = por %p60, %p61
      %p63 = scmp.ne.s32.totalorder %s52, %s55
      %p64 = scmp.eq.s32.totalorder %s33, 1
      %p65 = por %p63, %p64
      %p66 = scmp.ne.s32.totalorder %s55, %s56
      %p67 = scmp.eq.s32.totalorder %s33, 0
      %p68 = por %p66, %p67
      %p69 = scmp.ne.s32.totalorder %s55, %s56
      %p70 = scmp.eq.s32.totalorder %s34, 1
      %p71 = por %p69, %p70
      %p73 = scmp.ne.s32.totalorder %s56, %s72
      %p74 = scmp.eq.s32.totalorder %s34, 0
      %p75 = por %p73, %p74
      %s76 = ssub.s32 %s35, %s47
      %p77 = scmp.eq.s32.totalorder %s76, 0
      %s79 = sadd.s32 %s78, 1
      %s80 = scalar_select %p77, %s78, %s79
      %p83 = pneg %p77
      %p84 = scmp.eq.s32.totalorder %s28, 1
      %p85 = por %p83, %p84
      %p86 = scmp.ne.s32.totalorder %s78, %s81
      %p87 = scmp.eq.s32.totalorder %s28, 0
      %p88 = por %p86, %p87
      %p89 = scmp.ne.s32.totalorder %s78, %s81
      %p90 = scmp.eq.s32.totalorder %s33, 1
      %p91 = por %p89, %p90
      %p92 = scmp.ne.s32.totalorder %s81, %s82
      %p93 = scmp.eq.s32.totalorder %s33, 0
      %p94 = por %p92, %p93
      %p95 = scmp.ne.s32.totalorder %s81, %s82
      %p96 = scmp.eq.s32.totalorder %s34, 1
      %p97 = por %p95, %p96
      %p99 = scmp.ne.s32.totalorder %s82, %s98
      %p100 = scmp.eq.s32.totalorder %s34, 0
      %p101 = por %p99, %p100
      %s102 = ssub.s32 %s35, %s47
      %p103 = scmp.eq.s32.totalorder %s102, 0
      %s105 = sadd.s32 %s104, 1
      %s106 = scalar_select %p103, %s104, %s105
      %p109 = pneg %p103
      %p110 = scmp.eq.s32.totalorder %s28, 1
      %p111 = por %p109, %p110
      %p112 = scmp.ne.s32.totalorder %s104, %s107
      %p113 = scmp.eq.s32.totalorder %s28, 0
      %p114 = por %p112, %p113
      %p115 = scmp.ne.s32.totalorder %s104, %s107
      %p116 = scmp.eq.s32.totalorder %s33, 1
      %p117 = por %p115, %p116
      %p118 = scmp.ne.s32.totalorder %s107, %s108
      %p119 = scmp.eq.s32.totalorder %s33, 0
      %p120 = por %p118, %p119
      %p121 = scmp.ne.s32.totalorder %s107, %s108
      %p122 = scmp.eq.s32.totalorder %s34, 1
      %p123 = por %p121, %p122
      %p125 = scmp.ne.s32.totalorder %s108, %s124
      %p126 = scmp.eq.s32.totalorder %s34, 0
      %p127 = por %p125, %p126
      %s128 = ssub.s32 %s35, %s47
      %s129 = ssub.s32 %s36, %s43
      %s130 = sor.u32 %s128, %s129
      %p131 = scmp.eq.s32.totalorder %s130, 0
      %s133 = sadd.s32 %s132, 1
      %s134 = scalar_select %p131, %s132, %s133
      %p137 = pneg %p131
      %p138 = scmp.eq.s32.totalorder %s28, 1
      %p139 = por %p137, %p138
      %p140 = scmp.ne.s32.totalorder %s132, %s135
      %p141 = scmp.eq.s32.totalorder %s28, 0
      %p142 = por %p140, %p141
      %p143 = scmp.ne.s32.totalorder %s132, %s135
      %p144 = scmp.eq.s32.totalorder %s33, 1
      %p145 = por %p143, %p144
      %p146 = scmp.ne.s32.totalorder %s135, %s136
      %p147 = scmp.eq.s32.totalorder %s33, 0
      %p148 = por %p146, %p147
      %p149 = scmp.ne.s32.totalorder %s135, %s136
      %p150 = scmp.eq.s32.totalorder %s34, 1
      %p151 = por %p149, %p150
      %p153 = scmp.ne.s32.totalorder %s136, %s152
      %p154 = scmp.eq.s32.totalorder %s34, 0
      %p155 = por %p153, %p154
      %s157 = sadd.s32 %s156, 1
      %p160 = scmp.eq.s32.totalorder %s28, 1
      %p161 = scmp.ne.s32.totalorder %s156, %s158
      %p162 = scmp.eq.s32.totalorder %s28, 0
      %p163 = por %p161, %p162
      %p164 = scmp.ne.s32.totalorder %s156, %s158
      %p165 = scmp.eq.s32.totalorder %s33, 1
      %p166 = por %p164, %p165
      %p167 = scmp.ne.s32.totalorder %s158, %s159
      %p168 = scmp.eq.s32.totalorder %s33, 0
      %p169 = por %p167, %p168
      %p170 = scmp.ne.s32.totalorder %s158, %s159
      %p171 = scmp.eq.s32.totalorder %s34, 1
      %p172 = por %p170, %p171
      %p174 = scmp.ne.s32.totalorder %s159, %s173
      %p175 = scmp.eq.s32.totalorder %s34, 0
      %p176 = por %p174, %p175
      %s178 = sadd.s32 %s177, 1
      %p181 = scmp.eq.s32.totalorder %s28, 1
      %p182 = scmp.ne.s32.totalorder %s177, %s179
      %p183 = scmp.eq.s32.totalorder %s28, 0
      %p184 = por %p182, %p183
      %p185 = scmp.ne.s32.totalorder %s177, %s179
      %p186 = scmp.eq.s32.totalorder %s33, 1
      %p187 = por %p185, %p186
      %p188 = scmp.ne.s32.totalorder %s179, %s180
      %p189 = scmp.eq.s32.totalorder %s33, 0
      %p190 = por %p188, %p189
      %p191 = scmp.ne.s32.totalorder %s179, %s180
      %p192 = scmp.eq.s32.totalorder %s34, 1
      %p193 = por %p191, %p192
      %p195 = scmp.ne.s32.totalorder %s180, %s194
      %p196 = scmp.eq.s32.totalorder %s34, 0
      %p197 = por %p195, %p196
      %s199 = sadd.s32 %s198, 1
      %p202 = scmp.eq.s32.totalorder %s28, 1
      %p203 = scmp.ne.s32.totalorder %s198, %s200
      %p204 = scmp.eq.s32.totalorder %s28, 0
      %p205 = por %p203, %p204
      %p206 = scmp.ne.s32.totalorder %s198, %s200
      %p207 = scmp.eq.s32.totalorder %s33, 1
      %p208 = por %p206, %p207
      %p209 = scmp.ne.s32.totalorder %s200, %s201
      %p210 = scmp.eq.s32.totalorder %s33, 0
      %p211 = por %p209, %p210
      %p212 = scmp.ne.s32.totalorder %s200, %s201
      %p213 = scmp.eq.s32.totalorder %s34, 1
      %p214 = por %p212, %p213
      %p216 = scmp.ne.s32.totalorder %s201, %s215
      %p217 = scmp.eq.s32.totalorder %s34, 0
      %p218 = por %p216, %p217
      %s220 = sadd.s32 %s219, 1
      %p223 = scmp.eq.s32.totalorder %s28, 1
      %p224 = scmp.ne.s32.totalorder %s219, %s221
      %p225 = scmp.eq.s32.totalorder %s28, 0
      %p226 = por %p224, %p225
      %p227 = scmp.ne.s32.totalorder %s219, %s221
      %p228 = scmp.eq.s32.totalorder %s33, 1
      %p229 = por %p227, %p228
      %p230 = scmp.ne.s32.totalorder %s221, %s222
      %p231 = scmp.eq.s32.totalorder %s33, 0
      %p232 = por %p230, %p231
      %p233 = scmp.ne.s32.totalorder %s221, %s222
      %p234 = scmp.eq.s32.totalorder %s34, 1
      %p235 = por %p233, %p234
      %p237 = scmp.ne.s32.totalorder %s222, %s236
      %p238 = scmp.eq.s32.totalorder %s34, 0
      %p239 = por %p237, %p238
      %s241 = sadd.s32 %s240, 1
      %p244 = scmp.eq.s32.totalorder %s28, 1
      %p245 = scmp.ne.s32.totalorder %s240, %s242
      %p246 = scmp.eq.s32.totalorder %s28, 0
      %p247 = por %p245, %p246
      %p248 = scmp.ne.s32.totalorder %s240, %s242
      %p249 = scmp.eq.s32.totalorder %s33, 1
      %p250 = por %p248, %p249
      %p251 = scmp.ne.s32.totalorder %s242, %s243
      %p252 = scmp.eq.s32.totalorder %s33, 0
      %p253 = por %p251, %p252
      %p254 = scmp.ne.s32.totalorder %s242, %s243
      %p255 = scmp.eq.s32.totalorder %s34, 1
      %p256 = por %p254, %p255
      %p258 = scmp.ne.s32.totalorder %s243, %s257
      %p259 = scmp.eq.s32.totalorder %s34, 0
      %p260 = por %p258, %p259
      %s261 = ssub.s32 %s35, %s47
      %s262 = ssub.s32 %s36, %s43
      %s263 = sor.u32 %s261, %s262
      %p264 = scmp.eq.s32.totalorder %s263, 0
      %s266 = sadd.s32 %s265, 1
      %s267 = scalar_select %p264, %s265, %s266
      %p270 = pneg %p264
      %p271 = scmp.eq.s32.totalorder %s28, 1
      %p272 = por %p270, %p271
      %p273 = scmp.ne.s32.totalorder %s265, %s268
      %p274 = scmp.eq.s32.totalorder %s28, 0
      %p275 = por %p273, %p274
      %p276 = scmp.ne.s32.totalorder %s265, %s268
      %p277 = scmp.eq.s32.totalorder %s33, 1
      %p278 = por %p276, %p277
      %p279 = scmp.ne.s32.totalorder %s268, %s269
      %p280 = scmp.eq.s32.totalorder %s33, 0
      %p281 = por %p279, %p280
      %p282 = scmp.ne.s32.totalorder %s268, %s269
      %p283 = scmp.eq.s32.totalorder %s34, 1
      %p284 = por %p282, %p283
      %p286 = scmp.ne.s32.totalorder %s269, %s285
      %p287 = scmp.eq.s32.totalorder %s34, 0
      %p288 = por %p286, %p287
      %p289 = scmp.le.s32.totalorder 1, %s28
      %p290 = scmp.lt.s32.totalorder %s28, 3
      %p291 = pnand %p289, %p290
      %p292 = pneg %p291
      // Predicated region
      $region9: #{tpu_custom_call.1} parent=5 // pred_check
        _
      $region10: #{tpu_custom_call.1} parent=5 // pred_check_branch
        %294 = sbr.rel (%p291) target = $region12
      $region11: #{tpu_custom_call.1} parent=5 // pred_region
        %s295 = ssub.s32 %s28, 1
        // Predicated region
        $region13: #{tpu_custom_call.1} parent=11 // pred_check
          %p296 = pneg %p169
        $region14: #{tpu_custom_call.1} parent=11 // pred_check_branch
          %298 = sbr.rel (%p296) target = $region16
        $region15: #{tpu_custom_call.1} parent=11 // pred_region
          %s300 = ssub.s32 256, 256
          %301 = vsyncadd [#allocation9], %s300
          %s302 = sshll.u32 [#allocation10], 4
          %s303 = int_to_ptr.vmem [resolvable:$true] %s302
          %308 = dma.hbm_to_vmem [thread:$0]  %s4, 256, %s303, [#allocation9], 64, 64, 4
        $region16: #{tpu_custom_call.1} parent=11 // pred_fallthru
          _
        // Predicated region
        $region17: #{tpu_custom_call.1} parent=11 // pred_check
          %p309 = pneg %p190
        $region18: #{tpu_custom_call.1} parent=11 // pred_check_branch
          %311 = sbr.rel (%p309) target = $region20
        $region19: #{tpu_custom_call.1} parent=11 // pred_region
          _
        $region20: #{tpu_custom_call.1} parent=11 // pred_fallthru
          _
        // Predicated region
        $region21: #{tpu_custom_call.1} parent=11 // pred_check
          %p312 = pneg %p211
        $region22: #{tpu_custom_call.1} parent=11 // pred_check_branch
          %314 = sbr.rel (%p312) target = $region24
        $region23: #{tpu_custom_call.1} parent=11 // pred_region
          %s316 = ssub.s32 256, 256
          %317 = vsyncadd [#allocation12], %s316
          %s318 = sshll.u32 [#allocation11], 4
          %s319 = int_to_ptr.vmem [resolvable:$true] %s318
          %324 = dma.hbm_to_vmem [thread:$0]  %s6, 256, %s319, [#allocation12], 64, 64, 4
        $region24: #{tpu_custom_call.1} parent=11 // pred_fallthru
          _
        // Predicated region
        $region25: #{tpu_custom_call.1} parent=11 // pred_check
          %p325 = pneg %p232
        $region26: #{tpu_custom_call.1} parent=11 // pred_check_branch
          %327 = sbr.rel (%p325) target = $region28
        $region27: #{tpu_custom_call.1} parent=11 // pred_region
          %s329 = ssub.s32 256, 256
          %330 = vsyncadd [#allocation12], %s329
          %s331 = sshll.u32 [#allocation13], 4
          %s332 = int_to_ptr.vmem [resolvable:$true] %s331
          %337 = dma.hbm_to_vmem [thread:$0]  %s7, 256, %s332, [#allocation12], 64, 64, 4
        $region28: #{tpu_custom_call.1} parent=11 // pred_fallthru
          _
        // Predicated region
        $region29: #{tpu_custom_call.1} parent=11 // pred_check
          %p338 = pneg %p253
        $region30: #{tpu_custom_call.1} parent=11 // pred_check_branch
          %340 = sbr.rel (%p338) target = $region32
        $region31: #{tpu_custom_call.1} parent=11 // pred_region
          _
        $region32: #{tpu_custom_call.1} parent=11 // pred_fallthru
          _
      $region12: #{tpu_custom_call.1} parent=5 // pred_fallthru
        _
      %p341 = scmp.lt.s32.totalorder %s28, 2
      // Predicated region
      $region33: #{tpu_custom_call.1} parent=5 // pred_check
        %p342 = pneg %p341
      $region34: #{tpu_custom_call.1} parent=5 // pred_check_branch
        %344 = sbr.rel (%p342) target = $region36
      $region35: #{tpu_custom_call.1} parent=5 // pred_region
        // Predicated region
        $region37: #{tpu_custom_call.1} parent=35 // pred_check
          %p345 = pneg %p62
        $region38: #{tpu_custom_call.1} parent=35 // pred_check_branch
          %347 = sbr.rel (%p345) target = $region40
        $region39: #{tpu_custom_call.1} parent=35 // pred_region
          %s348 = sand.u32 %s52, 1
          %s349 = scalar_lea.sflag [#allocation3], %s348
          %s350 = sand.u32 %s52, 1
          %s351 = smul.addr %s350, 4
          %s352 = scalar_lea.vmem [#allocation2], %s351
          %s354 = ssub.s32 64, 64
          %355 = vsyncadd %s349, %s354
          %s356 = sadd.s32 %s36, %s35
          %s357 = smul.addr %s356, 64
          %s358 = scalar_lea.hbm %s0, %s357
          %s360 = sshll.u32 %s352, 4
          %s361 = int_to_ptr.vmem [resolvable:$true] %s360
          %363 = dma.hbm_to_vmem [thread:$0]  %s358, 64, %s361, %s349
        $region40: #{tpu_custom_call.1} parent=35 // pred_fallthru
          _
        // Predicated region
        $region41: #{tpu_custom_call.1} parent=35 // pred_check
          %p364 = pneg %p88
        $region42: #{tpu_custom_call.1} parent=35 // pred_check_branch
          %366 = sbr.rel (%p364) target = $region44
        $region43: #{tpu_custom_call.1} parent=35 // pred_region
          %s367 = sand.u32 %s28, 1
          %s368 = scalar_lea.sflag [#allocation6], %s367
          %s369 = sand.u32 %s78, 1
          %s370 = smul.addr %s369, 4
          %s371 = scalar_lea.vmem [#allocation5], %s370
          %s373 = ssub.s32 64, 64
          %374 = vsyncadd %s368, %s373
          %s375 = smul.addr %s35, 64
          %s376 = scalar_lea.hbm %s1, %s375
          %s378 = sshll.u32 %s371, 4
          %s379 = int_to_ptr.vmem [resolvable:$true] %s378
          %381 = dma.hbm_to_vmem [thread:$0]  %s376, 64, %s379, %s368
        $region44: #{tpu_custom_call.1} parent=35 // pred_fallthru
          _
        // Predicated region
        $region45: #{tpu_custom_call.1} parent=35 // pred_check
          %p382 = pneg %p114
        $region46: #{tpu_custom_call.1} parent=35 // pred_check_branch
          %384 = sbr.rel (%p382) target = $region48
        $region47: #{tpu_custom_call.1} parent=35 // pred_region
          %s385 = sand.u32 %s28, 1
          %s386 = scalar_lea.sflag [#allocation6], %s385
          %s387 = sand.u32 %s104, 1
          %s388 = smul.addr %s387, 4
          %s389 = scalar_lea.vmem [#allocation7], %s388
          %s391 = ssub.s32 64, 64
          %392 = vsyncadd %s386, %s391
          %s393 = smul.addr %s35, 64
          %s394 = scalar_lea.hbm %s2, %s393
          %s396 = sshll.u32 %s389, 4
          %s397 = int_to_ptr.vmem [resolvable:$true] %s396
          %399 = dma.hbm_to_vmem [thread:$0]  %s394, 64, %s397, %s386
        $region48: #{tpu_custom_call.1} parent=35 // pred_fallthru
          _
        // Predicated region
        $region49: #{tpu_custom_call.1} parent=35 // pred_check
          %p400 = pneg %p142
        $region50: #{tpu_custom_call.1} parent=35 // pred_check_branch
          %402 = sbr.rel (%p400) target = $region52
        $region51: #{tpu_custom_call.1} parent=35 // pred_region
          %s403 = sand.u32 %s28, 1
          %s404 = scalar_lea.sflag [#allocation9], %s403
          %s405 = sand.u32 %s132, 1
          %s406 = smul.addr %s405, 4
          %s407 = scalar_lea.vmem [#allocation8], %s406
          %s409 = ssub.s32 64, 64
          %410 = vsyncadd %s404, %s409
          %s411 = sadd.s32 %s36, %s35
          %s412 = smul.addr %s411, 64
          %s413 = scalar_lea.hbm %s3, %s412
          %s415 = sshll.u32 %s407, 4
          %s416 = int_to_ptr.vmem [resolvable:$true] %s415
          %418 = dma.hbm_to_vmem [thread:$0]  %s413, 64, %s416, %s404
        $region52: #{tpu_custom_call.1} parent=35 // pred_fallthru
          _
      $region36: #{tpu_custom_call.1} parent=5 // pred_fallthru
        _
      %p419 = scmp.le.s32.totalorder 1, %s28
      %p420 = scmp.lt.s32.totalorder %s28, 3
      %p421 = pnand %p419, %p420
      %p422 = pneg %p421
      // Predicated region
      $region53: #{tpu_custom_call.1} parent=5 // pred_check
        _
      $region54: #{tpu_custom_call.1} parent=5 // pred_check_branch
        %424 = sbr.rel (%p421) target = $region56
      $region55: #{tpu_custom_call.1} parent=5 // pred_region
        %s425 = ssub.s32 %s28, 1
        %s426 = sand.u32 %s55, 1
        %s427 = scalar_lea.sflag [#allocation3], %s426
        %s428 = sand.u32 %s55, 1
        %s429 = smul.addr %s428, 4
        %s430 = scalar_lea.vmem [#allocation2], %s429
        // Predicated region
        $region57: #{tpu_custom_call.1} parent=55 // pred_check
          %p431 = pneg %p68
        $region58: #{tpu_custom_call.1} parent=55 // pred_check_branch
          %433 = sbr.rel (%p431) target = $region60
        $region59: #{tpu_custom_call.1} parent=55 // pred_region
          %434 = dma.done %s427, 64
        $region60: #{tpu_custom_call.1} parent=55 // pred_fallthru
          _
        %s435 = sand.u32 %s33, 1
        %s436 = scalar_lea.sflag [#allocation6], %s435
        %s437 = sand.u32 %s81, 1
        %s438 = smul.addr %s437, 4
        %s439 = scalar_lea.vmem [#allocation5], %s438
        // Predicated region
        $region61: #{tpu_custom_call.1} parent=55 // pred_check
          %p440 = pneg %p94
        $region62: #{tpu_custom_call.1} parent=55 // pred_check_branch
          %442 = sbr.rel (%p440) target = $region64
        $region63: #{tpu_custom_call.1} parent=55 // pred_region
          %443 = dma.done %s436, 64
        $region64: #{tpu_custom_call.1} parent=55 // pred_fallthru
          _
        %s444 = sand.u32 %s33, 1
        %s445 = scalar_lea.sflag [#allocation6], %s444
        %s446 = sand.u32 %s107, 1
        %s447 = smul.addr %s446, 4
        %s448 = scalar_lea.vmem [#allocation7], %s447
        // Predicated region
        $region65: #{tpu_custom_call.1} parent=55 // pred_check
          %p449 = pneg %p120
        $region66: #{tpu_custom_call.1} parent=55 // pred_check_branch
          %451 = sbr.rel (%p449) target = $region68
        $region67: #{tpu_custom_call.1} parent=55 // pred_region
          %452 = dma.done %s445, 64
        $region68: #{tpu_custom_call.1} parent=55 // pred_fallthru
          _
        %s453 = sand.u32 %s33, 1
        %s454 = scalar_lea.sflag [#allocation9], %s453
        %s455 = sand.u32 %s135, 1
        %s456 = smul.addr %s455, 4
        %s457 = scalar_lea.vmem [#allocation8], %s456
        // Predicated region
        $region69: #{tpu_custom_call.1} parent=55 // pred_check
          %p458 = pneg %p148
        $region70: #{tpu_custom_call.1} parent=55 // pred_check_branch
          %460 = sbr.rel (%p458) target = $region72
        $region71: #{tpu_custom_call.1} parent=55 // pred_region
          %461 = dma.done %s454, 64
        $region72: #{tpu_custom_call.1} parent=55 // pred_fallthru
          _
        // Predicated region
        $region73: #{tpu_custom_call.1} parent=55 // pred_check
          %p462 = pneg %p169
        $region74: #{tpu_custom_call.1} parent=55 // pred_check_branch
          %464 = sbr.rel (%p462) target = $region76
        $region75: #{tpu_custom_call.1} parent=55 // pred_region
          %465 = dma.done [#allocation9], 256
        $region76: #{tpu_custom_call.1} parent=55 // pred_fallthru
          _
        // Predicated region
        $region77: #{tpu_custom_call.1} parent=55 // pred_check
          %p466 = pneg %p211
        $region78: #{tpu_custom_call.1} parent=55 // pred_check_branch
          %468 = sbr.rel (%p466) target = $region80
        $region79: #{tpu_custom_call.1} parent=55 // pred_region
          %469 = dma.done [#allocation12], 256
        $region80: #{tpu_custom_call.1} parent=55 // pred_fallthru
          _
        // Predicated region
        $region81: #{tpu_custom_call.1} parent=55 // pred_check
          %p470 = pneg %p232
        $region82: #{tpu_custom_call.1} parent=55 // pred_check_branch
          %472 = sbr.rel (%p470) target = $region84
        $region83: #{tpu_custom_call.1} parent=55 // pred_region
          %473 = dma.done [#allocation12], 256
        $region84: #{tpu_custom_call.1} parent=55 // pred_fallthru
          _
        %s474 = sand.u32 %s55, 1
        %s475 = scalar_lea.sflag [#allocation3], %s474
        %s476 = sand.u32 %s55, 1
        %s477 = smul.addr %s476, 4
        %s478 = scalar_lea.vmem [#allocation2], %s477
        %p479 = pneg %p68
        %p480 = pneg %p65
        %s481 = sand.u32 %s33, 1
        %s482 = scalar_lea.sflag [#allocation6], %s481
        %s483 = sand.u32 %s81, 1
        %s484 = smul.addr %s483, 4
        %s485 = scalar_lea.vmem [#allocation5], %s484
        %p486 = pneg %p94
        %p487 = pneg %p91
        %s488 = sand.u32 %s33, 1
        %s489 = scalar_lea.sflag [#allocation6], %s488
        %s490 = sand.u32 %s107, 1
        %s491 = smul.addr %s490, 4
        %s492 = scalar_lea.vmem [#allocation7], %s491
        %p493 = pneg %p120
        %p494 = pneg %p117
        %s495 = sand.u32 %s33, 1
        %s496 = scalar_lea.sflag [#allocation9], %s495
        %s497 = sand.u32 %s135, 1
        %s498 = smul.addr %s497, 4
        %s499 = scalar_lea.vmem [#allocation8], %s498
        %p500 = pneg %p148
        %p501 = pneg %p145
        %p502 = pneg %p169
        %p503 = pneg %p166
        %p504 = pneg %p190
        %p505 = pneg %p187
        %p506 = pneg %p211
        %p507 = pneg %p208
        %p508 = pneg %p232
        %p509 = pneg %p229
        %p510 = pneg %p253
        %p511 = pneg %p250
        %p512 = pneg %p281
        %p513 = pneg %p278
        %s514 = sand.u32 %s268, 1
        %s515 = scalar_lea.sflag [#allocation4], %s514
        %s516 = sand.u32 %s268, 1
        %s517 = smul.addr %s516, 8
        %s518 = scalar_lea.vmem [#allocation14], %s517
        %v520 = vld [vmem:[%s430] sm:$0xf]
        %v521 = vld [vmem:[#allocation10] sm:$0xf]
        %v522 = vld [vmem:[#allocation10 + $0x4] sm:$0xf]
        %v523 = vld [vmem:[#allocation10 + $0x8] sm:$0xf]
        %v524 = vld [vmem:[#allocation10 + $0xc] sm:$0xf]
        %v529 = vunpack.c.l.b16 %v521
        %v530 = vunpack.c.l.b16 %v522
        %v531 = vunpack.c.l.b16 %v523
        %v532 = vunpack.c.l.b16 %v524
        %v533 = vpack.c.b16 %v530, %v529
        %v534 = vpack.c.b16 %v532, %v531
        %vm537 = vcmask 261120
        %v539 = vsel %vm537, %v520, 0
        %541 = vmatprep.subr.bf16.mxu0 0
        %542 = vmatpush1.bf16.msra.mxu0 %v533
        %543 = vmatprep.subr.bf16.mxu0 0
        %544 = vmatpush1.bf16.msra.mxu0 %v534
        %545 = vmatprep.subr.bf16.mxu0 0
        %546 = vmatpush1.bf16.msra.mxu0 0
        %547 = vmatprep.subr.bf16.mxu0 0
        %548 = vmatpush1.bf16.msra.mxu0 0
        %549 = vmatprep.subr.bf16.mxu0 0
        %550 = vmatpush1.bf16.msra.mxu0 0
        %551 = vmatprep.subr.bf16.mxu0 0
        %552 = vmatpush1.bf16.msra.mxu0 0
        %553 = vmatprep.subr.bf16.mxu0 0
        %554 = vmatpush1.bf16.msra.mxu0 0
        %555 = vmatprep.subr.bf16.mxu0 0
        %556 = vmatpush1.bf16.msra.mxu0 0
        %557 = vmatprep.subr.bf16.mxu0 0
        %558 = vmatpush1.bf16.msra.mxu0 0
        %559 = vmatprep.subr.bf16.mxu0 0
        %560 = vmatpush1.bf16.msra.mxu0 0
        %561 = vmatprep.subr.bf16.mxu0 0
        %562 = vmatpush1.bf16.msra.mxu0 0
        %563 = vmatprep.subr.bf16.mxu0 0
        %564 = vmatpush1.bf16.msra.mxu0 0
        %565 = vmatprep.subr.bf16.mxu0 0
        %566 = vmatpush1.bf16.msra.mxu0 0
        %567 = vmatprep.subr.bf16.mxu0 0
        %568 = vmatpush1.bf16.msra.mxu0 0
        %569 = vmatprep.subr.bf16.mxu0 0
        %570 = vmatpush1.bf16.msra.mxu0 0
        %571 = vmatprep.subr.bf16.mxu0 0
        %572 = vmatpush1.bf16.msra.mxu0 0
        %573 = vmatprep.mubr.bf16.mxu0 0
        %574 = vmatmul.mubr.bf16.gmra.mrb[0].mxu0 %v539
        %v575 = vpop.f32.mrb[0].mxu0
        %v576 = vadd.f32 0.0, %v575
        %v577 = vpop.f32.mrb[0].mxu0
        %v578 = vpop.f32.mrb[0].mxu0
        %v579 = vpop.f32.mrb[0].mxu0
        %580 = vdwg.mxu0
        %v581 = vld [vmem:[%s439] sm:$0xf]
        %v582 = vld [vmem:[%s5] sm:$0xf]
        %v583 = vld [vmem:[%s5 + $0x4] sm:$0xf]
        %v584 = vld [vmem:[%s5 + $0x8] sm:$0xf]
        %v585 = vld [vmem:[%s5 + $0xc] sm:$0xf]
        %v590 = vunpack.c.l.b16 %v582
        %v591 = vunpack.c.l.b16 %v583
        %v592 = vunpack.c.l.b16 %v584
        %v593 = vunpack.c.l.b16 %v585
        %v594 = vpack.c.b16 %v591, %v590
        %v595 = vpack.c.b16 %v593, %v592
        %v599 = vsel %vm537, %v581, 0
        %601 = vmatprep.subr.bf16.mxu0 0
        %602 = vmatpush1.bf16.msra.mxu0 %v594
        %603 = vmatprep.subr.bf16.mxu0 0
        %604 = vmatpush1.bf16.msra.mxu0 %v595
        %605 = vmatprep.subr.bf16.mxu0 0
        %606 = vmatpush1.bf16.msra.mxu0 0
        %607 = vmatprep.subr.bf16.mxu0 0
        %608 = vmatpush1.bf16.msra.mxu0 0
        %609 = vmatprep.subr.bf16.mxu0 0
        %610 = vmatpush1.bf16.msra.mxu0 0
        %611 = vmatprep.subr.bf16.mxu0 0
        %612 = vmatpush1.bf16.msra.mxu0 0
        %613 = vmatprep.subr.bf16.mxu0 0
        %614 = vmatpush1.bf16.msra.mxu0 0
        %615 = vmatprep.subr.bf16.mxu0 0
        %616 = vmatpush1.bf16.msra.mxu0 0
        %617 = vmatprep.subr.bf16.mxu0 0
        %618 = vmatpush1.bf16.msra.mxu0 0
        %619 = vmatprep.subr.bf16.mxu0 0
        %620 = vmatpush1.bf16.msra.mxu0 0
        %621 = vmatprep.subr.bf16.mxu0 0
        %622 = vmatpush1.bf16.msra.mxu0 0
        %623 = vmatprep.subr.bf16.mxu0 0
        %624 = vmatpush1.bf16.msra.mxu0 0
        %625 = vmatprep.subr.bf16.mxu0 0
        %626 = vmatpush1.bf16.msra.mxu0 0
        %627 = vmatprep.subr.bf16.mxu0 0
        %628 = vmatpush1.bf16.msra.mxu0 0
        %629 = vmatprep.subr.bf16.mxu0 0
        %630 = vmatpush1.bf16.msra.mxu0 0
        %631 = vmatprep.subr.bf16.mxu0 0
        %632 = vmatpush1.bf16.msra.mxu0 0
        %633 = vmatprep.mubr.bf16.mxu0 0
        %634 = vmatmul.mubr.bf16.gmra.mrb[0].mxu0 %v599
        %v635 = vpop.f32.mrb[0].mxu0
        %v636 = vadd.f32 0.0, %v635
        %v637 = vpop.f32.mrb[0].mxu0
        %v638 = vpop.f32.mrb[0].mxu0
        %v639 = vpop.f32.mrb[0].mxu0
        %640 = vdwg.mxu0
        %v641 = vld [vmem:[%s448] sm:$0xf]
        %v642 = vld [vmem:[#allocation11] sm:$0xf]
        %v643 = vld [vmem:[#allocation11 + $0x4] sm:$0xf]
        %v644 = vld [vmem:[#allocation11 + $0x8] sm:$0xf]
        %v645 = vld [vmem:[#allocation11 + $0xc] sm:$0xf]
        %v650 = vunpack.c.l.b16 %v642
        %v651 = vunpack.c.l.b16 %v643
        %v652 = vunpack.c.l.b16 %v644
        %v653 = vunpack.c.l.b16 %v645
        %v654 = vpack.c.b16 %v651, %v650
        %v655 = vpack.c.b16 %v653, %v652
        %v659 = vsel %vm537, %v641, 0
        %661 = vmatprep.subr.bf16.mxu0 0
        %662 = vmatpush1.bf16.msra.mxu0 %v654
        %663 = vmatprep.subr.bf16.mxu0 0
        %664 = vmatpush1.bf16.msra.mxu0 %v655
        %665 = vmatprep.subr.bf16.mxu0 0
        %666 = vmatpush1.bf16.msra.mxu0 0
        %667 = vmatprep.subr.bf16.mxu0 0
        %668 = vmatpush1.bf16.msra.mxu0 0
        %669 = vmatprep.subr.bf16.mxu0 0
        %670 = vmatpush1.bf16.msra.mxu0 0
        %671 = vmatprep.subr.bf16.mxu0 0
        %672 = vmatpush1.bf16.msra.mxu0 0
        %673 = vmatprep.subr.bf16.mxu0 0
        %674 = vmatpush1.bf16.msra.mxu0 0
        %675 = vmatprep.subr.bf16.mxu0 0
        %676 = vmatpush1.bf16.msra.mxu0 0
        %677 = vmatprep.subr.bf16.mxu0 0
        %678 = vmatpush1.bf16.msra.mxu0 0
        %679 = vmatprep.subr.bf16.mxu0 0
        %680 = vmatpush1.bf16.msra.mxu0 0
        %681 = vmatprep.subr.bf16.mxu0 0
        %682 = vmatpush1.bf16.msra.mxu0 0
        %683 = vmatprep.subr.bf16.mxu0 0
        %684 = vmatpush1.bf16.msra.mxu0 0
        %685 = vmatprep.subr.bf16.mxu0 0
        %686 = vmatpush1.bf16.msra.mxu0 0
        %687 = vmatprep.subr.bf16.mxu0 0
        %688 = vmatpush1.bf16.msra.mxu0 0
        %689 = vmatprep.subr.bf16.mxu0 0
        %690 = vmatpush1.bf16.msra.mxu0 0
        %691 = vmatprep.subr.bf16.mxu0 0
        %692 = vmatpush1.bf16.msra.mxu0 0
        %693 = vmatprep.mubr.bf16.mxu0 0
        %694 = vmatmul.mubr.bf16.gmra.mrb[0].mxu0 %v659
        %v695 = vpop.f32.mrb[0].mxu0
        %v696 = vadd.f32 0.0, %v695
        %v697 = vpop.f32.mrb[0].mxu0
        %v698 = vpop.f32.mrb[0].mxu0
        %v699 = vpop.f32.mrb[0].mxu0
        %700 = vdwg.mxu0
        %v701 = vld [vmem:[%s457] sm:$0xf]
        %v702 = vunpack.c.l.bf16 %v701
        %v703 = vpack.c.bf16 %v576, %v576
        %v704 = vpack.c.bf16 %v636, %v636
        %v705 = vpack.c.bf16 %v696, %v696
        %vm706 = vcmask 64512
        %v708 = vsel %vm706, %v703, 0
        %v711 = vsel %vm706, %v704, 0
        %713 = vmatprep.subr.bf16.mxu0 0
        %714 = vmatpush1.bf16.xpose.msra.mxu0 %v711
        %715 = vmatprep.subr.bf16.mxu0 0
        %716 = vmatpush1.bf16.xpose.msra.mxu0 0
        %717 = vmatprep.subr.bf16.mxu0 0
        %718 = vmatpush1.bf16.xpose.msra.mxu0 0
        %719 = vmatprep.subr.bf16.mxu0 0
        %720 = vmatpush1.bf16.xpose.msra.mxu0 0
        %721 = vmatprep.subr.bf16.mxu0 0
        %722 = vmatpush1.bf16.xpose.msra.mxu0 0
        %723 = vmatprep.subr.bf16.mxu0 0
        %724 = vmatpush1.bf16.xpose.msra.mxu0 0
        %725 = vmatprep.subr.bf16.mxu0 0
        %726 = vmatpush1.bf16.xpose.msra.mxu0 0
        %727 = vmatprep.subr.bf16.mxu0 0
        %728 = vmatpush1.bf16.xpose.msra.mxu0 0
        %729 = vmatprep.subr.bf16.mxu0 0
        %730 = vmatpush1.bf16.xpose.msra.mxu0 0
        %731 = vmatprep.subr.bf16.mxu0 0
        %732 = vmatpush1.bf16.xpose.msra.mxu0 0
        %733 = vmatprep.subr.bf16.mxu0 0
        %734 = vmatpush1.bf16.xpose.msra.mxu0 0
        %735 = vmatprep.subr.bf16.mxu0 0
        %736 = vmatpush1.bf16.xpose.msra.mxu0 0
        %737 = vmatprep.subr.bf16.mxu0 0
        %738 = vmatpush1.bf16.xpose.msra.mxu0 0
        %739 = vmatprep.subr.bf16.mxu0 0
        %740 = vmatpush1.bf16.xpose.msra.mxu0 0
        %741 = vmatprep.subr.bf16.mxu0 0
        %742 = vmatpush1.bf16.xpose.msra.mxu0 0
        %743 = vmatprep.subr.bf16.mxu0 0
        %744 = vmatpush1.bf16.xpose.msra.mxu0 0
        %745 = vmatprep.mubr.bf16.mxu0 0
        %746 = vmatmul.mubr.bf16.gmra.mrb[0].mxu0 %v708
        %v747 = vpop.f32.mrb[0].mxu0
        %v748 = vadd.f32 %v702, %v747
        %v749 = vpop.f32.mrb[0].mxu0
        %v750 = vpop.f32.mrb[0].mxu0
        %v751 = vpop.f32.mrb[0].mxu0
        %752 = vdwg.mxu0
        %v753 = vsel %vm706, %v748, -inf
        %754 = vmax.xlane.f32.xlu0 %v753
        %v755 = vpop.xlane.xlu0 %754
        %v756 = vsub.f32 %v748, %v755
        %v757 = vmul.f32 %v756, 1.442695
        %v758 = vpow.pop %v757
        %v759 = vsel %vm706, %v758, 0.0
        %760 = vadd.xlane.f32.xlu0 %v759
        %v761 = vpop.xlane.xlu0 %760
        %v762 = vrcp.pop %v761
        %v763 = vmul.f32 %v758, %v762
        %v764 = vpack.c.bf16 %v763, %v763
        %v766 = vsel %vm706, %v764, 0
        %vm768 = vcmask 1043456
        %v770 = vsel %vm768, %v705, 0
        %772 = vmatprep.subr.bf16.mxu0 0
        %773 = vmatpush1.bf16.msra.mxu0 %v770
        %774 = vmatprep.subr.bf16.mxu0 0
        %775 = vmatpush1.bf16.msra.mxu0 0
        %776 = vmatprep.subr.bf16.mxu0 0
        %777 = vmatpush1.bf16.msra.mxu0 0
        %778 = vmatprep.subr.bf16.mxu0 0
        %779 = vmatpush1.bf16.msra.mxu0 0
        %780 = vmatprep.subr.bf16.mxu0 0
        %781 = vmatpush1.bf16.msra.mxu0 0
        %782 = vmatprep.subr.bf16.mxu0 0
        %783 = vmatpush1.bf16.msra.mxu0 0
        %784 = vmatprep.subr.bf16.mxu0 0
        %785 = vmatpush1.bf16.msra.mxu0 0
        %786 = vmatprep.subr.bf16.mxu0 0
        %787 = vmatpush1.bf16.msra.mxu0 0
        %788 = vmatprep.subr.bf16.mxu0 0
        %789 = vmatpush1.bf16.msra.mxu0 0
        %790 = vmatprep.subr.bf16.mxu0 0
        %791 = vmatpush1.bf16.msra.mxu0 0
        %792 = vmatprep.subr.bf16.mxu0 0
        %793 = vmatpush1.bf16.msra.mxu0 0
        %794 = vmatprep.subr.bf16.mxu0 0
        %795 = vmatpush1.bf16.msra.mxu0 0
        %796 = vmatprep.subr.bf16.mxu0 0
        %797 = vmatpush1.bf16.msra.mxu0 0
        %798 = vmatprep.subr.bf16.mxu0 0
        %799 = vmatpush1.bf16.msra.mxu0 0
        %800 = vmatprep.subr.bf16.mxu0 0
        %801 = vmatpush1.bf16.msra.mxu0 0
        %802 = vmatprep.subr.bf16.mxu0 0
        %803 = vmatpush1.bf16.msra.mxu0 0
        %804 = vmatprep.mubr.bf16.mxu0 0
        %805 = vmatmul.mubr.bf16.gmra.mrb[0].mxu0 %v766
        %v806 = vpop.f32.mrb[0].mxu0
        %v807 = vadd.f32 0.0, %v806
        %v808 = vpop.f32.mrb[0].mxu0
        %v809 = vpop.f32.mrb[0].mxu0
        %v810 = vpop.f32.mrb[0].mxu0
        %811 = vdwg.mxu0
        %813 = vrot.lane.b32.xlu0 %v703, 120
        %v814 = vpop.permute.xlu0 %813
        %816 = vrot.lane.b32.xlu0 %v704, 120
        %v817 = vpop.permute.xlu0 %816
        %v819 = vsel %vm706, %v814, 0
        %v822 = vsel %vm706, %v817, 0
        %824 = vmatprep.subr.bf16.mxu0 0
        %825 = vmatpush1.bf16.xpose.msra.mxu0 %v822
        %826 = vmatprep.subr.bf16.mxu0 0
        %827 = vmatpush1.bf16.xpose.msra.mxu0 0
        %828 = vmatprep.subr.bf16.mxu0 0
        %829 = vmatpush1.bf16.xpose.msra.mxu0 0
        %830 = vmatprep.subr.bf16.mxu0 0
        %831 = vmatpush1.bf16.xpose.msra.mxu0 0
        %832 = vmatprep.subr.bf16.mxu0 0
        %833 = vmatpush1.bf16.xpose.msra.mxu0 0
        %834 = vmatprep.subr.bf16.mxu0 0
        %835 = vmatpush1.bf16.xpose.msra.mxu0 0
        %836 = vmatprep.subr.bf16.mxu0 0
        %837 = vmatpush1.bf16.xpose.msra.mxu0 0
        %838 = vmatprep.subr.bf16.mxu0 0
        %839 = vmatpush1.bf16.xpose.msra.mxu0 0
        %840 = vmatprep.subr.bf16.mxu0 0
        %841 = vmatpush1.bf16.xpose.msra.mxu0 0
        %842 = vmatprep.subr.bf16.mxu0 0
        %843 = vmatpush1.bf16.xpose.msra.mxu0 0
        %844 = vmatprep.subr.bf16.mxu0 0
        %845 = vmatpush1.bf16.xpose.msra.mxu0 0
        %846 = vmatprep.subr.bf16.mxu0 0
        %847 = vmatpush1.bf16.xpose.msra.mxu0 0
        %848 = vmatprep.subr.bf16.mxu0 0
        %849 = vmatpush1.bf16.xpose.msra.mxu0 0
        %850 = vmatprep.subr.bf16.mxu0 0
        %851 = vmatpush1.bf16.xpose.msra.mxu0 0
        %852 = vmatprep.subr.bf16.mxu0 0
        %853 = vmatpush1.bf16.xpose.msra.mxu0 0
        %854 = vmatprep.subr.bf16.mxu0 0
        %855 = vmatpush1.bf16.xpose.msra.mxu0 0
        %856 = vmatprep.mubr.bf16.mxu0 0
        %857 = vmatmul.mubr.bf16.gmra.mrb[0].mxu0 %v819
        %v858 = vpop.f32.mrb[0].mxu0
        %v859 = vadd.f32 %v702, %v858
        %v860 = vpop.f32.mrb[0].mxu0
        %v861 = vpop.f32.mrb[0].mxu0
        %v862 = vpop.f32.mrb[0].mxu0
        %863 = vdwg.mxu0
        %v864 = vsel %vm706, %v859, -inf
        %865 = vmax.xlane.f32.xlu0 %v864
        %v866 = vpop.xlane.xlu0 %865
        %v867 = vsub.f32 %v859, %v866
        %v868 = vmul.f32 %v867, 1.442695
        %v869 = vpow.pop %v868
        %v870 = vsel %vm706, %v869, 0.0
        %871 = vadd.xlane.f32.xlu0 %v870
        %v872 = vpop.xlane.xlu0 %871
        %v873 = vrcp.pop %v872
        %v874 = vmul.f32 %v869, %v873
        %v875 = vpack.c.bf16 %v874, %v874
        %877 = vrot.lane.b32.xlu0 %v705, 120
        %v878 = vpop.permute.xlu0 %877
        %v880 = vsel %vm706, %v875, 0
        %v883 = vsel %vm768, %v878, 0
        %885 = vmatprep.subr.bf16.mxu0 0
        %886 = vmatpush1.bf16.msra.mxu0 %v883
        %887 = vmatprep.subr.bf16.mxu0 0
        %888 = vmatpush1.bf16.msra.mxu0 0
        %889 = vmatprep.subr.bf16.mxu0 0
        %890 = vmatpush1.bf16.msra.mxu0 0
        %891 = vmatprep.subr.bf16.mxu0 0
        %892 = vmatpush1.bf16.msra.mxu0 0
        %893 = vmatprep.subr.bf16.mxu0 0
        %894 = vmatpush1.bf16.msra.mxu0 0
        %895 = vmatprep.subr.bf16.mxu0 0
        %896 = vmatpush1.bf16.msra.mxu0 0
        %897 = vmatprep.subr.bf16.mxu0 0
        %898 = vmatpush1.bf16.msra.mxu0 0
        %899 = vmatprep.subr.bf16.mxu0 0
        %900 = vmatpush1.bf16.msra.mxu0 0
        %901 = vmatprep.subr.bf16.mxu0 0
        %902 = vmatpush1.bf16.msra.mxu0 0
        %903 = vmatprep.subr.bf16.mxu0 0
        %904 = vmatpush1.bf16.msra.mxu0 0
        %905 = vmatprep.subr.bf16.mxu0 0
        %906 = vmatpush1.bf16.msra.mxu0 0
        %907 = vmatprep.subr.bf16.mxu0 0
        %908 = vmatpush1.bf16.msra.mxu0 0
        %909 = vmatprep.subr.bf16.mxu0 0
        %910 = vmatpush1.bf16.msra.mxu0 0
        %911 = vmatprep.subr.bf16.mxu0 0
        %912 = vmatpush1.bf16.msra.mxu0 0
        %913 = vmatprep.subr.bf16.mxu0 0
        %914 = vmatpush1.bf16.msra.mxu0 0
        %915 = vmatprep.subr.bf16.mxu0 0
        %916 = vmatpush1.bf16.msra.mxu0 0
        %917 = vmatprep.mubr.bf16.mxu0 0
        %918 = vmatmul.mubr.bf16.gmra.mrb[0].mxu0 %v880
        %v919 = vpop.f32.mrb[0].mxu0
        %v920 = vadd.f32 0.0, %v919
        %v921 = vpop.f32.mrb[0].mxu0
        %v922 = vpop.f32.mrb[0].mxu0
        %v923 = vpop.f32.mrb[0].mxu0
        %924 = vdwg.mxu0
        %925 = vrot.lane.b32.xlu0 %v703, 112
        %v926 = vpop.permute.xlu0 %925
        %927 = vrot.lane.b32.xlu0 %v704, 112
        %v928 = vpop.permute.xlu0 %927
        %v930 = vsel %vm706, %v926, 0
        %v933 = vsel %vm706, %v928, 0
        %935 = vmatprep.subr.bf16.mxu0 0
        %936 = vmatpush1.bf16.xpose.msra.mxu0 %v933
        %937 = vmatprep.subr.bf16.mxu0 0
        %938 = vmatpush1.bf16.xpose.msra.mxu0 0
        %939 = vmatprep.subr.bf16.mxu0 0
        %940 = vmatpush1.bf16.xpose.msra.mxu0 0
        %941 = vmatprep.subr.bf16.mxu0 0
        %942 = vmatpush1.bf16.xpose.msra.mxu0 0
        %943 = vmatprep.subr.bf16.mxu0 0
        %944 = vmatpush1.bf16.xpose.msra.mxu0 0
        %945 = vmatprep.subr.bf16.mxu0 0
        %946 = vmatpush1.bf16.xpose.msra.mxu0 0
        %947 = vmatprep.subr.bf16.mxu0 0
        %948 = vmatpush1.bf16.xpose.msra.mxu0 0
        %949 = vmatprep.subr.bf16.mxu0 0
        %950 = vmatpush1.bf16.xpose.msra.mxu0 0
        %951 = vmatprep.subr.bf16.mxu0 0
        %952 = vmatpush1.bf16.xpose.msra.mxu0 0
        %953 = vmatprep.subr.bf16.mxu0 0
        %954 = vmatpush1.bf16.xpose.msra.mxu0 0
        %955 = vmatprep.subr.bf16.mxu0 0
        %956 = vmatpush1.bf16.xpose.msra.mxu0 0
        %957 = vmatprep.subr.bf16.mxu0 0
        %958 = vmatpush1.bf16.xpose.msra.mxu0 0
        %959 = vmatprep.subr.bf16.mxu0 0
        %960 = vmatpush1.bf16.xpose.msra.mxu0 0
        %961 = vmatprep.subr.bf16.mxu0 0
        %962 = vmatpush1.bf16.xpose.msra.mxu0 0
        %963 = vmatprep.subr.bf16.mxu0 0
        %964 = vmatpush1.bf16.xpose.msra.mxu0 0
        %965 = vmatprep.subr.bf16.mxu0 0
        %966 = vmatpush1.bf16.xpose.msra.mxu0 0
        %967 = vmatprep.mubr.bf16.mxu0 0
        %968 = vmatmul.mubr.bf16.gmra.mrb[0].mxu0 %v930
        %v969 = vpop.f32.mrb[0].mxu0
        %v970 = vadd.f32 %v702, %v969
        %v971 = vpop.f32.mrb[0].mxu0
        %v972 = vpop.f32.mrb[0].mxu0
        %v973 = vpop.f32.mrb[0].mxu0
        %974 = vdwg.mxu0
        %v975 = vsel %vm706, %v970, -inf
        %976 = vmax.xlane.f32.xlu0 %v975
        %v977 = vpop.xlane.xlu0 %976
        %v978 = vsub.f32 %v970, %v977
        %v979 = vmul.f32 %v978, 1.442695
        %v980 = vpow.pop %v979
        %v981 = vsel %vm706, %v980, 0.0
        %982 = vadd.xlane.f32.xlu0 %v981
        %v983 = vpop.xlane.xlu0 %982
        %v984 = vrcp.pop %v983
        %v985 = vmul.f32 %v980, %v984
        %v986 = vpack.c.bf16 %v985, %v985
        %987 = vrot.lane.b32.xlu0 %v705, 112
        %v988 = vpop.permute.xlu0 %987
        %v990 = vsel %vm706, %v986, 0
        %v993 = vsel %vm768, %v988, 0
        %995 = vmatprep.subr.bf16.mxu0 0
        %996 = vmatpush1.bf16.msra.mxu0 %v993
        %997 = vmatprep.subr.bf16.mxu0 0
        %998 = vmatpush1.bf16.msra.mxu0 0
        %999 = vmatprep.subr.bf16.mxu0 0
        %1000 = vmatpush1.bf16.msra.mxu0 0
        %1001 = vmatprep.subr.bf16.mxu0 0
        %1002 = vmatpush1.bf16.msra.mxu0 0
        %1003 = vmatprep.subr.bf16.mxu0 0
        %1004 = vmatpush1.bf16.msra.mxu0 0
        %1005 = vmatprep.subr.bf16.mxu0 0
        %1006 = vmatpush1.bf16.msra.mxu0 0
        %1007 = vmatprep.subr.bf16.mxu0 0
        %1008 = vmatpush1.bf16.msra.mxu0 0
        %1009 = vmatprep.subr.bf16.mxu0 0
        %1010 = vmatpush1.bf16.msra.mxu0 0
        %1011 = vmatprep.subr.bf16.mxu0 0
        %1012 = vmatpush1.bf16.msra.mxu0 0
        %1013 = vmatprep.subr.bf16.mxu0 0
        %1014 = vmatpush1.bf16.msra.mxu0 0
        %1015 = vmatprep.subr.bf16.mxu0 0
        %1016 = vmatpush1.bf16.msra.mxu0 0
        %1017 = vmatprep.subr.bf16.mxu0 0
        %1018 = vmatpush1.bf16.msra.mxu0 0
        %1019 = vmatprep.subr.bf16.mxu0 0
        %1020 = vmatpush1.bf16.msra.mxu0 0
        %1021 = vmatprep.subr.bf16.mxu0 0
        %1022 = vmatpush1.bf16.msra.mxu0 0
        %1023 = vmatprep.subr.bf16.mxu0 0
        %1024 = vmatpush1.bf16.msra.mxu0 0
        %1025 = vmatprep.subr.bf16.mxu0 0
        %1026 = vmatpush1.bf16.msra.mxu0 0
        %1027 = vmatprep.mubr.bf16.mxu0 0
        %1028 = vmatmul.mubr.bf16.gmra.mrb[0].mxu0 %v990
        %v1029 = vpop.f32.mrb[0].mxu0
        %v1030 = vadd.f32 0.0, %v1029
        %v1031 = vpop.f32.mrb[0].mxu0
        %v1032 = vpop.f32.mrb[0].mxu0
        %v1033 = vpop.f32.mrb[0].mxu0
        %1034 = vdwg.mxu0
        %1035 = vrot.lane.b32.xlu0 %v703, 104
        %v1036 = vpop.permute.xlu0 %1035
        %1037 = vrot.lane.b32.xlu0 %v704, 104
        %v1038 = vpop.permute.xlu0 %1037
        %v1040 = vsel %vm706, %v1036, 0
        %v1043 = vsel %vm706, %v1038, 0
        %1045 = vmatprep.subr.bf16.mxu0 0
        %1046 = vmatpush1.bf16.xpose.msra.mxu0 %v1043
        %1047 = vmatprep.subr.bf16.mxu0 0
        %1048 = vmatpush1.bf16.xpose.msra.mxu0 0
        %1049 = vmatprep.subr.bf16.mxu0 0
        %1050 = vmatpush1.bf16.xpose.msra.mxu0 0
        %1051 = vmatprep.subr.bf16.mxu0 0
        %1052 = vmatpush1.bf16.xpose.msra.mxu0 0
        %1053 = vmatprep.subr.bf16.mxu0 0
        %1054 = vmatpush1.bf16.xpose.msra.mxu0 0
        %1055 = vmatprep.subr.bf16.mxu0 0
        %1056 = vmatpush1.bf16.xpose.msra.mxu0 0
        %1057 = vmatprep.subr.bf16.mxu0 0
        %1058 = vmatpush1.bf16.xpose.msra.mxu0 0
        %1059 = vmatprep.subr.bf16.mxu0 0
        %1060 = vmatpush1.bf16.xpose.msra.mxu0 0
        %1061 = vmatprep.subr.bf16.mxu0 0
        %1062 = vmatpush1.bf16.xpose.msra.mxu0 0
        %1063 = vmatprep.subr.bf16.mxu0 0
        %1064 = vmatpush1.bf16.xpose.msra.mxu0 0
        %1065 = vmatprep.subr.bf16.mxu0 0
        %1066 = vmatpush1.bf16.xpose.msra.mxu0 0
        %1067 = vmatprep.subr.bf16.mxu0 0
        %1068 = vmatpush1.bf16.xpose.msra.mxu0 0
        %1069 = vmatprep.subr.bf16.mxu0 0
        %1070 = vmatpush1.bf16.xpose.msra.mxu0 0
        %1071 = vmatprep.subr.bf16.mxu0 0
        %1072 = vmatpush1.bf16.xpose.msra.mxu0 0
        %1073 = vmatprep.subr.bf16.mxu0 0
        %1074 = vmatpush1.bf16.xpose.msra.mxu0 0
        %1075 = vmatprep.subr.bf16.mxu0 0
        %1076 = vmatpush1.bf16.xpose.msra.mxu0 0
        %1077 = vmatprep.mubr.bf16.mxu0 0
        %1078 = vmatmul.mubr.bf16.gmra.mrb[0].mxu0 %v1040
        %v1079 = vpop.f32.mrb[0].mxu0
        %v1080 = vadd.f32 %v702, %v1079
        %v1081 = vpop.f32.mrb[0].mxu0
        %v1082 = vpop.f32.mrb[0].mxu0
        %v1083 = vpop.f32.mrb[0].mxu0
        %1084 = vdwg.mxu0
        %v1085 = vsel %vm706, %v1080, -inf
        %1086 = vmax.xlane.f32.xlu0 %v1085
        %v1087 = vpop.xlane.xlu0 %1086
        %v1088 = vsub.f32 %v1080, %v1087
        %v1089 = vmul.f32 %v1088, 1.442695
        %v1090 = vpow.pop %v1089
        %v1091 = vsel %vm706, %v1090, 0.0
        %1092 = vadd.xlane.f32.xlu0 %v1091
        %v1093 = vpop.xlane.xlu0 %1092
        %v1094 = vrcp.pop %v1093
        %v1095 = vmul.f32 %v1090, %v1094
        %v1096 = vpack.c.bf16 %v1095, %v1095
        %1097 = vrot.lane.b32.xlu0 %v705, 104
        %v1098 = vpop.permute.xlu0 %1097
        %v1100 = vsel %vm706, %v1096, 0
        %v1103 = vsel %vm768, %v1098, 0
        %1105 = vmatprep.subr.bf16.mxu0 0
        %1106 = vmatpush1.bf16.msra.mxu0 %v1103
        %1107 = vmatprep.subr.bf16.mxu0 0
        %1108 = vmatpush1.bf16.msra.mxu0 0
        %1109 = vmatprep.subr.bf16.mxu0 0
        %1110 = vmatpush1.bf16.msra.mxu0 0
        %1111 = vmatprep.subr.bf16.mxu0 0
        %1112 = vmatpush1.bf16.msra.mxu0 0
        %1113 = vmatprep.subr.bf16.mxu0 0
        %1114 = vmatpush1.bf16.msra.mxu0 0
        %1115 = vmatprep.subr.bf16.mxu0 0
        %1116 = vmatpush1.bf16.msra.mxu0 0
        %1117 = vmatprep.subr.bf16.mxu0 0
        %1118 = vmatpush1.bf16.msra.mxu0 0
        %1119 = vmatprep.subr.bf16.mxu0 0
        %1120 = vmatpush1.bf16.msra.mxu0 0
        %1121 = vmatprep.subr.bf16.mxu0 0
        %1122 = vmatpush1.bf16.msra.mxu0 0
        %1123 = vmatprep.subr.bf16.mxu0 0
        %1124 = vmatpush1.bf16.msra.mxu0 0
        %1125 = vmatprep.subr.bf16.mxu0 0
        %1126 = vmatpush1.bf16.msra.mxu0 0
        %1127 = vmatprep.subr.bf16.mxu0 0
        %1128 = vmatpush1.bf16.msra.mxu0 0
        %1129 = vmatprep.subr.bf16.mxu0 0
        %1130 = vmatpush1.bf16.msra.mxu0 0
        %1131 = vmatprep.subr.bf16.mxu0 0
        %1132 = vmatpush1.bf16.msra.mxu0 0
        %1133 = vmatprep.subr.bf16.mxu0 0
        %1134 = vmatpush1.bf16.msra.mxu0 0
        %1135 = vmatprep.subr.bf16.mxu0 0
        %1136 = vmatpush1.bf16.msra.mxu0 0
        %1137 = vmatprep.mubr.bf16.mxu0 0
        %1138 = vmatmul.mubr.bf16.gmra.mrb[0].mxu0 %v1100
        %v1139 = vpop.f32.mrb[0].mxu0
        %v1140 = vadd.f32 0.0, %v1139
        %v1141 = vpop.f32.mrb[0].mxu0
        %v1142 = vpop.f32.mrb[0].mxu0
        %v1143 = vpop.f32.mrb[0].mxu0
        %1144 = vdwg.mxu0
        %1146 = vrot.lane.b32.xlu0 %v920, 8
        %v1147 = vpop.permute.xlu0 %1146
        %1150 = vrot.lane.b32.xlu0 %v1030, 16
        %v1151 = vpop.permute.xlu0 %1150
        %1154 = vrot.lane.b32.xlu0 %v1140, 24
        %v1155 = vpop.permute.xlu0 %1154
        %v1157 = vsel %vm706, %v807, %v1147
        %vm1158 = vcmask 130048
        %v1159 = vsel %vm1158, %v1157, %v1151
        %vm1160 = vcmask 195584
        %v1161 = vsel %vm1160, %v1159, %v1155
        %v1162 = vpack.c.bf16 %v1161, %v1161
        %v1163 = vld [vmem:[#allocation13] sm:$0xf]
        %v1164 = vld [vmem:[#allocation13 + $0x4] sm:$0xf]
        %v1165 = vld [vmem:[#allocation13 + $0x8] sm:$0xf]
        %v1166 = vld [vmem:[#allocation13 + $0xc] sm:$0xf]
        %v1167 = vld [vmem:[%s8] sm:$0x1]
        %v1169 = vlaneseq
        %v1170 = vshrl.u32 %v1169, 7
        %v1171 = vsub.s32 0, %v1170
        %v1172 = vrot.slane %v1167, %v1171
        %v1178 = vunpack.c.l.b16 %v1163
        %v1179 = vunpack.c.l.b16 %v1164
        %v1180 = vunpack.c.l.b16 %v1165
        %v1181 = vunpack.c.l.b16 %v1166
        %v1182 = vpack.c.b16 %v1179, %v1178
        %v1183 = vpack.c.b16 %v1181, %v1180
        %v1187 = vsel %vm537, %v1162, 0
        %1189 = vmatprep.subr.bf16.mxu0 0
        %1190 = vmatpush1.bf16.msra.mxu0 %v1182
        %1191 = vmatprep.subr.bf16.mxu0 0
        %1192 = vmatpush1.bf16.msra.mxu0 %v1183
        %1193 = vmatprep.subr.bf16.mxu0 0
        %1194 = vmatpush1.bf16.msra.mxu0 0
        %1195 = vmatprep.subr.bf16.mxu0 0
        %1196 = vmatpush1.bf16.msra.mxu0 0
        %1197 = vmatprep.subr.bf16.mxu0 0
        %1198 = vmatpush1.bf16.msra.mxu0 0
        %1199 = vmatprep.subr.bf16.mxu0 0
        %1200 = vmatpush1.bf16.msra.mxu0 0
        %1201 = vmatprep.subr.bf16.mxu0 0
        %1202 = vmatpush1.bf16.msra.mxu0 0
        %1203 = vmatprep.subr.bf16.mxu0 0
        %1204 = vmatpush1.bf16.msra.mxu0 0
        %1205 = vmatprep.subr.bf16.mxu0 0
        %1206 = vmatpush1.bf16.msra.mxu0 0
        %1207 = vmatprep.subr.bf16.mxu0 0
        %1208 = vmatpush1.bf16.msra.mxu0 0
        %1209 = vmatprep.subr.bf16.mxu0 0
        %1210 = vmatpush1.bf16.msra.mxu0 0
        %1211 = vmatprep.subr.bf16.mxu0 0
        %1212 = vmatpush1.bf16.msra.mxu0 0
        %1213 = vmatprep.subr.bf16.mxu0 0
        %1214 = vmatpush1.bf16.msra.mxu0 0
        %1215 = vmatprep.subr.bf16.mxu0 0
        %1216 = vmatpush1.bf16.msra.mxu0 0
        %1217 = vmatprep.subr.bf16.mxu0 0
        %1218 = vmatpush1.bf16.msra.mxu0 0
        %1219 = vmatprep.subr.bf16.mxu0 0
        %1220 = vmatpush1.bf16.msra.mxu0 0
        %1221 = vmatprep.mubr.bf16.mxu0 0
        %1222 = vmatmul.mubr.bf16.gmra.mrb[0].mxu0 %v1187
        %v1223 = vpop.f32.mrb[0].mxu0
        %v1224 = vadd.f32 %v1172, %v1223
        %v1225 = vpop.f32.mrb[0].mxu0
        %v1226 = vpop.f32.mrb[0].mxu0
        %v1227 = vpop.f32.mrb[0].mxu0
        %1228 = vdwg.mxu0
        %1229 = vst.msk [vmem:[%s518] sm:$0xff] %vm537, %v1224
        %s1230 = sand.u32 %s268, 1
        %s1231 = scalar_lea.sflag [#allocation4], %s1230
        %s1232 = sand.u32 %s268, 1
        %s1233 = smul.addr %s1232, 8
        %s1234 = scalar_lea.vmem [#allocation14], %s1233
        // Predicated region
        $region85: #{tpu_custom_call.1} parent=55 // pred_check
          %p1235 = pneg %p278
        $region86: #{tpu_custom_call.1} parent=55 // pred_check_branch
          %1237 = sbr.rel (%p1235) target = $region88
        $region87: #{tpu_custom_call.1} parent=55 // pred_region
          %s1239 = ssub.s32 128, 128
          %1240 = vsyncadd %s1231, %s1239
          %s1241 = sadd.s32 %s38, %s37
          %s1242 = smul.addr %s1241, 128
          %s1243 = scalar_lea.hbm %s9, %s1242
          %s1245 = sshll.u32 %s1234, 4
          %s1246 = int_to_ptr.vmem [resolvable:$true] %s1245
          %1248 = dma.vmem_to_hbm [thread:$0]  %s1246, 128, %s1243, %s1231
        $region88: #{tpu_custom_call.1} parent=55 // pred_fallthru
          _
      $region56: #{tpu_custom_call.1} parent=5 // pred_fallthru
        _
      %p1249 = scmp.le.s32.totalorder 2, %s28
      // Predicated region
      $region89: #{tpu_custom_call.1} parent=5 // pred_check
        %p1250 = pneg %p1249
      $region90: #{tpu_custom_call.1} parent=5 // pred_check_branch
        %1252 = sbr.rel (%p1250) target = $region92
      $region91: #{tpu_custom_call.1} parent=5 // pred_region
        %s1253 = ssub.s32 %s28, 2
        // Predicated region
        $region93: #{tpu_custom_call.1} parent=91 // pred_check
          %p1254 = pneg %p284
        $region94: #{tpu_custom_call.1} parent=91 // pred_check_branch
          %1256 = sbr.rel (%p1254) target = $region96
        $region95: #{tpu_custom_call.1} parent=91 // pred_region
          %s1257 = sand.u32 %s269, 1
          %s1258 = scalar_lea.sflag [#allocation4], %s1257
          %s1259 = sand.u32 %s269, 1
          %s1260 = smul.addr %s1259, 8
          %s1261 = scalar_lea.vmem [#allocation14], %s1260
          %1262 = dma.done %s1258, 128
        $region96: #{tpu_custom_call.1} parent=91 // pred_fallthru
          _
      $region92: #{tpu_custom_call.1} parent=5 // pred_fallthru
        _
    $region6: #{tpu_custom_call.1} parent=1 // loop_footer
      %s32 = sadd.s32 1, %s28
    $region7: #{tpu_custom_call.1} parent=1 // loop_footer_branch
      %27 = sbr.rel target = $region3
    $region8: #{tpu_custom_call.1} parent=1 // loop_exit
      _
    %1263 = vsyncpa [#allocation3], 1
    %s1264 = scalar_lea.sflag [#allocation3], 1
    %1265 = vsyncpa %s1264, 1
    %1266 = vsyncpa [#allocation6], 1
    %s1267 = scalar_lea.sflag [#allocation6], 1
    %1268 = vsyncpa %s1267, 1
    %1269 = vsyncpa [#allocation9], 1
    %s1270 = scalar_lea.sflag [#allocation9], 1
    %1271 = vsyncpa %s1270, 1
    %1272 = vsyncpa [#allocation12], 1
    %1273 = vsyncpa [#allocation4], 1
    %s1274 = scalar_lea.sflag [#allocation4], 1
    %1275 = vsyncpa %s1274, 1

</llo_original>
